<compile_context>
chip_gen: v7x
topology: tpu7x:2x2x1
jax: 0.10.0
libtpu: 0.0.40
codegen_flags: <defaults>
</compile_context>

<pallas_src>
import functools

import jax
import jax.numpy as jnp
from jax.experimental import pallas as pl
from jax.experimental.pallas import tpu as pltpu


def _gated_gcn_kernel(row_g_ref, col_g_ref, col_s_ref,          # int32 index tiles
                      x_ref, ea_ref, wn_ref, bn_ref, we_ref, be_ref,
                      out_ref,
                      node_scr, acc_scr,
                      *, feat_tile, num_nodes):
    TD = feat_tile
    N = num_nodes
    e_step = pl.program_id(1)

    # ---- once per feature tile: fused node linears + residual init ----------
    @pl.when(e_step == 0)
    def _():
        # [N, 4*TD] = x @ [A_j | B_j | C_j | res_j] + packed biases (f32 acc).
        node_scr[...] = (
            jnp.dot(x_ref[...], wn_ref[...], preferred_element_type=jnp.float32)
            + bn_ref[...])
        # f32 accumulator starts as the residual branch res(x).
        acc_scr[...] = node_scr[:, 3 * TD:4 * TD]

    # ---- edge linear E(edge_attr) for this edge tile / feature tile ---------
    e_lin = (jnp.dot(ea_ref[...], we_ref[...], preferred_element_type=jnp.float32)
             + be_ref[...])                                        # [TE, TD]

    # ---- vectorized gather via one-hot MXU matmuls ---------------------------
    row_ids = row_g_ref[...]                                       # [TE, 1] int32
    col_ids = col_g_ref[...]                                       # [TE, 1] int32
    te = row_ids.shape[0]
    node_iota = jax.lax.broadcasted_iota(jnp.int32, (te, N), 1)    # [TE, N]
    gat_row = (node_iota == row_ids).astype(jnp.float32)           # padded (-1) rows -> 0
    gat_col = (node_iota == col_ids).astype(jnp.float32)
    ab = jnp.dot(gat_row, node_scr[:, 0:2 * TD],
                 preferred_element_type=jnp.float32)               # [TE, 2*TD] = [A|B](x)[row]
    c = jnp.dot(gat_col, node_scr[:, 2 * TD:3 * TD],
                preferred_element_type=jnp.float32)                # [TE, TD]   = C(x)[col]

    # ---- gate (f32 elementwise over the whole edge tile) ---------------------
    a_row = ab[:, 0:TD]
    b_row = ab[:, TD:2 * TD]
    m = jax.nn.sigmoid(b_row + c + e_lin) * a_row                  # [TE, TD]
    # Padded edges already have a_row == 0, so m == 0 there (no mask needed).

    # ---- scatter-add over col as a one-hot MXU matmul (== index_add_) --------
    col_lane = col_s_ref[...]                                      # [1, TE] int32
    scat_iota = jax.lax.broadcasted_iota(jnp.int32, (N, col_lane.shape[1]), 0)
    scat = (scat_iota == col_lane).astype(jnp.float32)             # [N, TE]; padded cols -> 0
    acc_scr[...] = acc_scr[...] + jnp.dot(m.dtype.type(1.0) * scat, m,
                                          preferred_element_type=jnp.float32)

    # ---- epilogue: relu + cast on the last edge tile --------------------------
    @pl.when(e_step == pl.num_programs(1) - 1)
    def _():
        out_ref[...] = jnp.maximum(acc_scr[...], 0.0).astype(out_ref.dtype)


def gated_gcn_forward(x, edge_index, edge_attr, params, *,
                      edge_tile=256, feat_tile=128, mxu_dtype=None):
    """Fused GatedGCN forward.

    edge_tile: 256 for v6e/v7x (fills the 256x256 MXU), 128 on v5e.
    feat_tile: keep < D when possible so the 'parallel' feature axis has >= 2
               tiles (v7x megacore).
    mxu_dtype: e.g. jnp.bfloat16 to cast MXU operands (x, edge_attr, weights)
               while accumulating in f32 (recommended on v6e/v7x).
    """
    N, D = x.shape
    E = edge_attr.shape[0]
    out_dtype = x.dtype

    TD = feat_tile if D % feat_tile == 0 else D
    assert D % TD == 0, "feature dim must be a multiple of the feature tile"
    n_dt = D // TD
    TE = edge_tile
    n_et = pl.cdiv(E, TE)
    E_pad = n_et * TE
    pad = E_pad - E

    # Pad edge list to whole tiles; padded entries use index -1 so their
    # one-hot rows/columns are identically zero inside the kernel.
    row = edge_index[0].astype(jnp.int32)
    col = edge_index[1].astype(jnp.int32)
    row_g = jnp.pad(row, (0, pad), constant_values=-1).reshape(E_pad, 1)
    col_g = jnp.pad(col, (0, pad), constant_values=-1).reshape(E_pad, 1)
    col_s = jnp.pad(col, (0, pad), constant_values=-1).reshape(1, E_pad)
    ea = jnp.pad(edge_attr, ((0, pad), (0, 0)))

    # Pack node-side weights per feature tile: columns [A_j | B_j | C_j | res_j].
    # (PyTorch nn.Linear stores weight as [out, in]; pre-transpose to [in, out].)
    def pack_w(names):
        ws = [jnp.asarray(params[n][0]).T.reshape(D, n_dt, TD) for n in names]
        return jnp.stack(ws, axis=2).reshape(D, n_dt * 4 * TD)

    def pack_b(names):
        bs = [jnp.asarray(params[n][1]).reshape(n_dt, TD) for n in names]
        return jnp.stack(bs, axis=1).reshape(1, n_dt * 4 * TD)

    node_names = ("A", "B", "C", "res")
    wn = pack_w(node_names)
    bn = pack_b(node_names).astype(jnp.float32)
    we = jnp.asarray(params["E"][0]).T                    # [D, D]  (in, out)
    be = jnp.asarray(params["E"][1]).reshape(1, D).astype(jnp.float32)

    if mxu_dtype is not None:
        # bf16 MXU operands, f32 accumulation; biases & gate math stay f32.
        x = x.astype(mxu_dtype)
        ea = ea.astype(mxu_dtype)
        wn = wn.astype(mxu_dtype)
        we = we.astype(mxu_dtype)

    kernel = functools.partial(_gated_gcn_kernel, feat_tile=TD, num_nodes=N)

    # Note: x / wn / bn / we / be are invariant along the inner edge axis; for
    # very large graphs hoist the fused node linear to XLA (or use
    # memory_space=pl.ANY + one manual copy) to drop their pipeline buffers —
    # at these sizes the footprint is negligible.
    grid_spec = pltpu.PrefetchScalarGridSpec(
        num_scalar_prefetch=0,
        grid=(n_dt, n_et),                              # (feature tiles, edge tiles)
        in_specs=[
            pl.BlockSpec((TE, 1), lambda j, e: (e, 0)),       # row (gather layout)
            pl.BlockSpec((TE, 1), lambda j, e: (e, 0)),       # col (gather layout)
            pl.BlockSpec((1, TE), lambda j, e: (0, e)),       # col (scatter layout)
            pl.BlockSpec((N, D), lambda j, e: (0, 0)),        # x (whole node set)
            pl.BlockSpec((TE, D), lambda j, e: (e, 0)),       # edge_attr (streams)
            pl.BlockSpec((D, 4 * TD), lambda j, e: (0, j)),   # packed node W
            pl.BlockSpec((1, 4 * TD), lambda j, e: (0, j)),   # packed node b
            pl.BlockSpec((D, TD), lambda j, e: (0, j)),       # W_E
            pl.BlockSpec((1, TD), lambda j, e: (0, j)),       # b_E
        ],
        out_specs=pl.BlockSpec((N, TD), lambda j, e: (0, j)),
        scratch_shapes=[
            pltpu.VMEM((N, 4 * TD), jnp.float32),   # fused node linears [A|B|C|res]
            pltpu.VMEM((N, TD), jnp.float32),       # f32 output accumulator
        ],
    )

    return pl.pallas_call(
        kernel,
        out_shape=jax.ShapeDtypeStruct((N, D), out_dtype),
        grid_spec=grid_spec,
        compiler_params=pltpu.CompilerParams(
            dimension_semantics=("parallel", "arbitrary")),
    )(row_g, col_g, col_s, x, ea, wn, bn, we, be)


def reference(x, edge_index, edge_attr, params):
    def lin(name, v):
        w, b = params[name]
        return v @ jnp.asarray(w).T + jnp.asarray(b)

    row, col = edge_index[0], edge_index[1]
    m = lin("B", x[row]) + lin("C", x[col]) + lin("E", edge_attr)
    m = jax.nn.sigmoid(m) * lin("A", x[row])
    agg = jnp.zeros_like(x).at[col].add(m)
    return jax.nn.relu(agg + lin("res", x))


if __name__ == "__main__":
    # nodes, feature dim (in_dim == out_dim), edges (not a multiple of the
    # 256-edge tile, to exercise -1 padding); grid = (2 feature, 3 edge) tiles.
    N, D, E = 32, 256, 600

    key = jax.random.PRNGKey(0)
    keys = jax.random.split(key, 16)

    x = jax.random.normal(keys[0], (N, D), dtype=jnp.float32)
    edge_attr = jax.random.normal(keys[1], (E, D), dtype=jnp.float32)
    row = jax.random.randint(keys[2], (E,), 0, N, dtype=jnp.int32)
    col = jax.random.randint(keys[3], (E,), 0, N, dtype=jnp.int32)
    edge_index = jnp.stack([row, col], axis=0)     # [2, E]

    # Deterministic parameter init: nn.Linear(D, D) -> weight [D, D], bias [D].
    params = {}
    for i, name in enumerate(("A", "B", "C", "E", "res")):
        w = 0.1 * jax.random.normal(keys[4 + 2 * i], (D, D), dtype=jnp.float32)
        b = 0.1 * jax.random.normal(keys[5 + 2 * i], (D,), dtype=jnp.float32)
        params[name] = (w, b)

    ref = jax.block_until_ready(reference(x, edge_index, edge_attr, params))

    # f32 MXU operands (default) — tight tolerance.
    out = jax.block_until_ready(gated_gcn_forward(x, edge_index, edge_attr, params))
    assert out.shape == (N, D) and out.dtype == jnp.float32
    assert jnp.allclose(out, ref, rtol=2e-2, atol=2e-2), "f32 path mismatch"

    # bf16 MXU operands with f32 accumulation (v6e/v7x path) — looser tolerance.
    out_bf16 = jax.block_until_ready(
        gated_gcn_forward(x, edge_index, edge_attr, params,
                          mxu_dtype=jnp.bfloat16))
    assert out_bf16.shape == (N, D)
    assert jnp.allclose(out_bf16, ref, rtol=5e-2, atol=2e-1), "bf16 path mismatch"

    print("KERNEL_OK")
</pallas_src>

<mosaic_0001>
module attributes {stable_mosaic.version = 11 : i64} {
  func.func @_gated_gcn_kernel(%arg0: i32, %arg1: i32, %arg2: memref<256x1xi32, #tpu.memory_space<vmem>>, %arg3: memref<256x1xi32, #tpu.memory_space<vmem>>, %arg4: memref<1x256xi32, #tpu.memory_space<vmem>>, %arg5: memref<32x256xf32, #tpu.memory_space<vmem>>, %arg6: memref<256x256xf32, #tpu.memory_space<vmem>>, %arg7: memref<256x512xf32, #tpu.memory_space<vmem>>, %arg8: memref<1x512xf32, #tpu.memory_space<vmem>>, %arg9: memref<256x128xf32, #tpu.memory_space<vmem>>, %arg10: memref<1x128xf32, #tpu.memory_space<vmem>>, %arg11: memref<32x128xf32, #tpu.memory_space<vmem>>, %arg12: memref<32x512xf32, #tpu.memory_space<vmem>>, %arg13: memref<32x128xf32, #tpu.memory_space<vmem>>) attributes {dimension_semantics = [#tpu.dimension_semantics<parallel>, #tpu.dimension_semantics<arbitrary>], iteration_bounds = array<i64: 2, 3>, scalar_prefetch = 0 : i64, scratch_operands = 2 : i64, tpu.core_type = #tpu.core_type<tc>, window_params = [{transform_indices = @transform_0, window_bounds = array<i64: 256, 1>}, {transform_indices = @transform_1, window_bounds = array<i64: 256, 1>}, {transform_indices = @transform_2, window_bounds = array<i64: 1, 256>}, {pipeline_mode = #tpu.pipeline_mode<synchronous>, transform_indices = @transform_3, window_bounds = array<i64: 32, 256>}, {transform_indices = @transform_4, window_bounds = array<i64: 256, 256>}, {transform_indices = @transform_5, window_bounds = array<i64: 256, 512>}, {transform_indices = @transform_6, window_bounds = array<i64: 1, 512>}, {transform_indices = @transform_7, window_bounds = array<i64: 256, 128>}, {transform_indices = @transform_8, window_bounds = array<i64: 1, 128>}, {transform_indices = @transform_9, window_bounds = array<i64: 32, 128>}]} {
    %c0_i32 = arith.constant 0 : i32
    %0 = arith.cmpi eq, %arg1, %c0_i32 : i32
    %1 = arith.extui %0 : i1 to i32
    %c0_i32_0 = arith.constant 0 : i32
    %2 = arith.cmpi ne, %1, %c0_i32_0 : i32
    scf.if %2 {
      %c0_25 = arith.constant 0 : index
      %c0_26 = arith.constant 0 : index
      %49 = vector.load %arg5[%c0_25, %c0_26] : memref<32x256xf32, #tpu.memory_space<vmem>>, vector<32x256xf32>
      %c0_27 = arith.constant 0 : index
      %c0_28 = arith.constant 0 : index
      %50 = vector.load %arg7[%c0_27, %c0_28] : memref<256x512xf32, #tpu.memory_space<vmem>>, vector<256x512xf32>
      %cst_29 = arith.constant dense<0.000000e+00> : vector<32x512xf32>
      %51 = tpu.matmul %49, %50, %cst_29 {dimension_numbers = #tpu.dot_dimension_numbers<[1], [0], [0], [1], [0, 0, 1, 1], [], []>} : vector<32x256xf32>, vector<256x512xf32>, vector<32x512xf32> -> vector<32x512xf32>
      %c0_30 = arith.constant 0 : index
      %c0_31 = arith.constant 0 : index
      %52 = vector.load %arg8[%c0_30, %c0_31] : memref<1x512xf32, #tpu.memory_space<vmem>>, vector<1x512xf32>
      %53 = vector.broadcast %52 : vector<1x512xf32> to vector<32x512xf32>
      %54 = arith.addf %51, %53 : vector<32x512xf32>
      %c0_32 = arith.constant 0 : index
      %c0_33 = arith.constant 0 : index
      %55 = vector.load %arg12[%c0_32, %c0_33] : memref<32x512xf32, #tpu.memory_space<vmem>>, vector<32x512xf32>
      tpu.vector_store %arg12[%c0_32, %c0_33], %54 {strides = array<i32>} : memref<32x512xf32, #tpu.memory_space<vmem>>, vector<32x512xf32>,
      %c0_34 = arith.constant 0 : index
      %c384 = arith.constant 384 : index
      %56 = vector.load %arg12[%c0_34, %c384] : memref<32x512xf32, #tpu.memory_space<vmem>>, vector<32x128xf32>
      %c0_35 = arith.constant 0 : index
      %c0_36 = arith.constant 0 : index
      %57 = vector.load %arg13[%c0_35, %c0_36] : memref<32x128xf32, #tpu.memory_space<vmem>>, vector<32x128xf32>
      tpu.vector_store %arg13[%c0_35, %c0_36], %56 {strides = array<i32>} : memref<32x128xf32, #tpu.memory_space<vmem>>, vector<32x128xf32>,
    } else {
    }
    %c0 = arith.constant 0 : index
    %c0_1 = arith.constant 0 : index
    %3 = vector.load %arg6[%c0, %c0_1] : memref<256x256xf32, #tpu.memory_space<vmem>>, vector<256x256xf32>
    %c0_2 = arith.constant 0 : index
    %c0_3 = arith.constant 0 : index
    %4 = vector.load %arg9[%c0_2, %c0_3] : memref<256x128xf32, #tpu.memory_space<vmem>>, vector<256x128xf32>
    %cst = arith.constant dense<0.000000e+00> : vector<256x128xf32>
    %5 = tpu.matmul %3, %4, %cst {dimension_numbers = #tpu.dot_dimension_numbers<[1], [0], [0], [1], [0, 0, 1, 1], [], []>} : vector<256x256xf32>, vector<256x128xf32>, vector<256x128xf32> -> vector<256x128xf32>
    %c0_4 = arith.constant 0 : index
    %c0_5 = arith.constant 0 : index
    %6 = vector.load %arg10[%c0_4, %c0_5] : memref<1x128xf32, #tpu.memory_space<vmem>>, vector<1x128xf32>
    %7 = vector.broadcast %6 : vector<1x128xf32> to vector<256x128xf32>
    %8 = arith.addf %5, %7 : vector<256x128xf32>
    %c0_6 = arith.constant 0 : index
    %c0_7 = arith.constant 0 : index
    %9 = vector.load %arg2[%c0_6, %c0_7] : memref<256x1xi32, #tpu.memory_space<vmem>>, vector<256x1xi32>
    %c0_8 = arith.constant 0 : index
    %c0_9 = arith.constant 0 : index
    %10 = vector.load %arg3[%c0_8, %c0_9] : memref<256x1xi32, #tpu.memory_space<vmem>>, vector<256x1xi32>
    %11 = tpu.iota {dimensions = array<i32: 1>} : vector<256x32xi32>
    %12 = vector.broadcast %9 : vector<256x1xi32> to vector<256x32xi32>
    %13 = arith.cmpi eq, %11, %12 : vector<256x32xi32>
    %14 = arith.extui %13 : vector<256x32xi1> to vector<256x32xi32>
    %15 = arith.sitofp %14 : vector<256x32xi32> to vector<256x32xf32>
    %16 = vector.broadcast %10 : vector<256x1xi32> to vector<256x32xi32>
    %17 = arith.cmpi eq, %11, %16 : vector<256x32xi32>
    %18 = arith.extui %17 : vector<256x32xi1> to vector<256x32xi32>
    %19 = arith.sitofp %18 : vector<256x32xi32> to vector<256x32xf32>
    %c0_10 = arith.constant 0 : index
    %c0_11 = arith.constant 0 : index
    %20 = vector.load %arg12[%c0_10, %c0_11] : memref<32x512xf32, #tpu.memory_space<vmem>>, vector<32x256xf32>
    %cst_12 = arith.constant dense<0.000000e+00> : vector<256x256xf32>
    %21 = tpu.matmul %15, %20, %cst_12 {dimension_numbers = #tpu.dot_dimension_numbers<[1], [0], [0], [1], [0, 0, 1, 1], [], []>} : vector<256x32xf32>, vector<32x256xf32>, vector<256x256xf32> -> vector<256x256xf32>
    %c0_13 = arith.constant 0 : index
    %c256 = arith.constant 256 : index
    %22 = vector.load %arg12[%c0_13, %c256] : memref<32x512xf32, #tpu.memory_space<vmem>>, vector<32x128xf32>
    %cst_14 = arith.constant dense<0.000000e+00> : vector<256x128xf32>
    %23 = tpu.matmul %19, %22, %cst_14 {dimension_numbers = #tpu.dot_dimension_numbers<[1], [0], [0], [1], [0, 0, 1, 1], [], []>} : vector<256x32xf32>, vector<32x128xf32>, vector<256x128xf32> -> vector<256x128xf32>
    %24 = vector.extract_strided_slice %21 {offsets = [0, 0], sizes = [256, 128], strides = [1, 1]} : vector<256x256xf32> to vector<256x128xf32>
    %25 = vector.extract_strided_slice %21 {offsets = [0, 128], sizes = [256, 128], strides = [1, 1]} : vector<256x256xf32> to vector<256x128xf32>
    %26 = arith.addf %25, %23 : vector<256x128xf32>
    %27 = arith.addf %26, %8 : vector<256x128xf32>
    %28 = arith.negf %27 : vector<256x128xf32>
    %29 = math.exp %28 : vector<256x128xf32>
    %cst_15 = arith.constant 1.000000e+00 : f32
    %30 = vector.broadcast %cst_15 : f32 to vector<256x128xf32>
    %31 = arith.addf %30, %29 : vector<256x128xf32>
    %32 = arith.divf %30, %31 : vector<256x128xf32>
    %33 = arith.mulf %32, %24 : vector<256x128xf32>
    %c0_16 = arith.constant 0 : index
    %c0_17 = arith.constant 0 : index
    %34 = vector.load %arg4[%c0_16, %c0_17] : memref<1x256xi32, #tpu.memory_space<vmem>>, vector<1x256xi32>
    %35 = tpu.iota {dimensions = array<i32: 0>} : vector<32x256xi32>
    %36 = vector.broadcast %34 : vector<1x256xi32> to vector<32x256xi32>
    %37 = arith.cmpi eq, %35, %36 : vector<32x256xi32>
    %38 = arith.extui %37 : vector<32x256xi1> to vector<32x256xi32>
    %39 = arith.sitofp %38 : vector<32x256xi32> to vector<32x256xf32>
    %c0_18 = arith.constant 0 : index
    %c0_19 = arith.constant 0 : index
    %40 = vector.load %arg13[%c0_18, %c0_19] : memref<32x128xf32, #tpu.memory_space<vmem>>, vector<32x128xf32>
    %cst_20 = arith.constant 1.000000e+00 : f32
    %41 = vector.broadcast %cst_20 : f32 to vector<32x256xf32>
    %42 = arith.mulf %41, %39 : vector<32x256xf32>
    %cst_21 = arith.constant dense<0.000000e+00> : vector<32x128xf32>
    %43 = tpu.matmul %42, %33, %cst_21 {dimension_numbers = #tpu.dot_dimension_numbers<[1], [0], [0], [1], [0, 0, 1, 1], [], []>} : vector<32x256xf32>, vector<256x128xf32>, vector<32x128xf32> -> vector<32x128xf32>
    %44 = arith.addf %40, %43 : vector<32x128xf32>
    %c0_22 = arith.constant 0 : index
    %c0_23 = arith.constant 0 : index
    %45 = vector.load %arg13[%c0_22, %c0_23] : memref<32x128xf32, #tpu.memory_space<vmem>>, vector<32x128xf32>
    tpu.vector_store %arg13[%c0_22, %c0_23], %44 {strides = array<i32>} : memref<32x128xf32, #tpu.memory_space<vmem>>, vector<32x128xf32>,
    %c2_i32 = arith.constant 2 : i32
    %46 = arith.cmpi eq, %arg1, %c2_i32 : i32
    %47 = arith.extui %46 : i1 to i32
    %c0_i32_24 = arith.constant 0 : i32
    %48 = arith.cmpi ne, %47, %c0_i32_24 : i32
    scf.if %48 {
      %c0_25 = arith.constant 0 : index
      %c0_26 = arith.constant 0 : index
      %49 = vector.load %arg13[%c0_25, %c0_26] : memref<32x128xf32, #tpu.memory_space<vmem>>, vector<32x128xf32>
      %cst_27 = arith.constant 0.000000e+00 : f32
      %50 = vector.broadcast %cst_27 : f32 to vector<32x128xf32>
      %51 = arith.maximumf %49, %50 : vector<32x128xf32>
      %c0_28 = arith.constant 0 : index
      %c0_29 = arith.constant 0 : index
      %52 = vector.load %arg11[%c0_28, %c0_29] : memref<32x128xf32, #tpu.memory_space<vmem>>, vector<32x128xf32>
      tpu.vector_store %arg11[%c0_28, %c0_29], %51 {strides = array<i32>} : memref<32x128xf32, #tpu.memory_space<vmem>>, vector<32x128xf32>,
    } else {
    }
    return
  }
  func.func @transform_0(%arg0: i32, %arg1: i32) -> (i32, i32) {
    %c0_i32 = arith.constant 0 : i32
    %c0_i32_0 = arith.constant 0 : i32
    return %arg1, %c0_i32 : i32, i32
  }
  func.func @transform_1(%arg0: i32, %arg1: i32) -> (i32, i32) {
    %c0_i32 = arith.constant 0 : i32
    %c0_i32_0 = arith.constant 0 : i32
    return %arg1, %c0_i32 : i32, i32
  }
  func.func @transform_2(%arg0: i32, %arg1: i32) -> (i32, i32) {
    %c0_i32 = arith.constant 0 : i32
    %c0_i32_0 = arith.constant 0 : i32
    return %c0_i32, %arg1 : i32, i32
  }
  func.func @transform_3(%arg0: i32, %arg1: i32) -> (i32, i32) {
    %c0_i32 = arith.constant 0 : i32
    %c0_i32_0 = arith.constant 0 : i32
    %c0_i32_1 = arith.constant 0 : i32
    return %c0_i32, %c0_i32_0 : i32, i32
  }
  func.func @transform_4(%arg0: i32, %arg1: i32) -> (i32, i32) {
    %c0_i32 = arith.constant 0 : i32
    %c0_i32_0 = arith.constant 0 : i32
    return %arg1, %c0_i32 : i32, i32
  }
  func.func @transform_5(%arg0: i32, %arg1: i32) -> (i32, i32) {
    %c0_i32 = arith.constant 0 : i32
    %c0_i32_0 = arith.constant 0 : i32
    return %c0_i32, %arg0 : i32, i32
  }
  func.func @transform_6(%arg0: i32, %arg1: i32) -> (i32, i32) {
    %c0_i32 = arith.constant 0 : i32
    %c0_i32_0 = arith.constant 0 : i32
    return %c0_i32, %arg0 : i32, i32
  }
  func.func @transform_7(%arg0: i32, %arg1: i32) -> (i32, i32) {
    %c0_i32 = arith.constant 0 : i32
    %c0_i32_0 = arith.constant 0 : i32
    return %c0_i32, %arg0 : i32, i32
  }
  func.func @transform_8(%arg0: i32, %arg1: i32) -> (i32, i32) {
    %c0_i32 = arith.constant 0 : i32
    %c0_i32_0 = arith.constant 0 : i32
    return %c0_i32, %arg0 : i32, i32
  }
  func.func @transform_9(%arg0: i32, %arg1: i32) -> (i32, i32) {
    %c0_i32 = arith.constant 0 : i32
    %c0_i32_0 = arith.constant 0 : i32
    return %c0_i32, %arg0 : i32, i32
  }
}

</mosaic_0001>

<llo_original>
// kernel: tpu_custom_call.1
$region0: #{tpu_custom_call.1}
  #allocation0 [shape = 'u32[]', space=smem, size = 0x4, offset = 0x4, fixed_abs, tag = 'smem constant byte address 0x4 - core index']
  #allocation1 [shape = 'u32[144,128]{1,0:T(1,128)}', space=vmem, size = 0x12000, scoped, tag = 'internal scratch']
  #allocation2 [shape = 'f32[32,512]{1,0:T(8,128)}', space=vmem, size = 0x10000, scoped, tag = 'scratch operand']
  #allocation3 [shape = 'f32[32,128]{1,0:T(8,128)}', space=vmem, size = 0x4000, scoped, tag = 'scratch operand']
  %s0 = inlined_call_operand.vmem [shape: s32[768,1], index: 0, kind: input, shape index: {}]
  %s1 = inlined_call_operand.vmem [shape: s32[768,1], index: 1, kind: input, shape index: {}]
  %s2 = inlined_call_operand.vmem [shape: s32[1,768], index: 2, kind: input, shape index: {}]
  %s3 = inlined_call_operand.hbm [shape: f32[32,256], index: 3, kind: input, shape index: {}]
  %s4 = inlined_call_operand.vmem [shape: f32[768,256], index: 4, kind: input, shape index: {}]
  %s5 = inlined_call_operand.hbm [shape: f32[256,1024], index: 5, kind: input, shape index: {}]
  %s6 = inlined_call_operand.vmem [shape: f32[1,1024], index: 6, kind: input, shape index: {}]
  %s7 = inlined_call_operand.hbm [shape: f32[256,256], index: 7, kind: input, shape index: {}]
  %s8 = inlined_call_operand.vmem [shape: f32[1,256], index: 8, kind: input, shape index: {}]
  %s9 = inlined_call_operand.hbm [shape: f32[32,256], index: 9, kind: output, shape index: {}]
  %s10 = sld [smem:[#allocation0]]
  $region89: #{tpu_custom_call.1} parent=0
    _
  %s12 = ssub.s32 1, %s10
  %s13 = scalar_select 0, %s12, %s10
  $region1: #{tpu_custom_call.1} parent=0
    #allocation4 [shape = 'u8[32768]{0}', space=vmem, size = 0x8000, scoped, tag = 'input window, operand 3, single buffered']
    #allocation5 [shape = 's32[2]{0}', space=sflag, size = 0x8, scoped, tag = 'scoped memory for tpu_custom_call.1']
    #allocation6 [shape = 's32[2]{0}', space=sflag, size = 0x8, scoped, tag = 'scoped memory for tpu_custom_call.1']
    #allocation7 [shape = 'u8[1048576]{0}', space=vmem, size = 0x100000, scoped, tag = 'input window, operand 5']
    #allocation8 [shape = 's32[2]{0}', space=sflag, size = 0x8, scoped, tag = 'scoped memory for tpu_custom_call.1']
    #allocation9 [shape = 'u8[262144]{0}', space=vmem, size = 0x40000, scoped, tag = 'input window, operand 7']
    #allocation10 [shape = 'u8[32768]{0}', space=vmem, size = 0x8000, scoped, tag = 'output window, operand 0']
    %14 = vsyncpa [#allocation5], 0
    %15 = vsyncpa [#allocation8], 0
    %s16 = scalar_lea.sflag [#allocation8], 1
    %17 = vsyncpa %s16, 0
    %18 = vsyncpa [#allocation6], 0
    %s19 = scalar_lea.sflag [#allocation6], 1
    %20 = vsyncpa %s19, 0
    loop: start=0, step=1, limit=8
    $region2: #{tpu_custom_call.1} parent=1 // loop_pre_header
      _
    $region3: #{tpu_custom_call.1} parent=1 // loop_header
      %s22 = sphi 0, %s26
      %p23 = scmp.ge.s32.totalorder %s22, 8
      %s29 = sphi 0, %s41
      %s30 = sphi 0, %s37
      %s31 = sphi 0, %s29
      %s32 = sphi 0, %s30
      %s33 = sphi 0, %s31
      %s34 = sphi 0, %s32
      %s44 = sphi 0, %s46
      %s47 = sphi 0, %s44
      %s48 = sphi 0, %s47
      %s64 = sphi 0, %s48
      %s70 = sphi 0, %s72
      %s73 = sphi 0, %s70
      %s74 = sphi 0, %s73
      %s90 = sphi 0, %s74
      %s96 = sphi 0, %s98
      %s99 = sphi 0, %s96
      %s100 = sphi 0, %s99
      %s116 = sphi 0, %s100
      %s120 = sphi 0, %s120
      %s122 = sphi 0, %s120
      %s123 = sphi 0, %s122
      %s137 = sphi 0, %s123
      %s143 = sphi 0, %s145
      %s146 = sphi 0, %s143
      %s147 = sphi 0, %s146
      %s163 = sphi 0, %s147
      %s169 = sphi 0, %s171
      %s172 = sphi 0, %s169
      %s173 = sphi 0, %s172
      %s189 = sphi 0, %s173
      %s195 = sphi 0, %s197
      %s198 = sphi 0, %s195
      %s199 = sphi 0, %s198
      %s215 = sphi 0, %s199
      %s221 = sphi 0, %s223
      %s224 = sphi 0, %s221
      %s225 = sphi 0, %s224
      %s241 = sphi 0, %s225
      %s247 = sphi 0, %s249
      %s250 = sphi 0, %s247
      %s251 = sphi 0, %s250
      %s267 = sphi 0, %s251
      %s273 = sphi 0, %s275
      %s276 = sphi 0, %s273
      %s277 = sphi 0, %s276
      %s293 = sphi 0, %s277
    $region4: #{tpu_custom_call.1} parent=1 // loop_header_branch
      %25 = sbr.rel (%p23) target = $region8
    $region5: #{tpu_custom_call.1} parent=1 // loop_body
      %s27 = ssub.s32 %s22, 1
      %s28 = ssub.s32 %s22, 2
      %s35 = sadd.s32 1, %s30
      %p36 = scmp.ge.s32.totalorder %s35, 3
      %s37 = scalar_select %p36, 0, %s35
      %s38 = sadd.s32 1, %s29
      %s39 = scalar_select %p36, %s38, %s29
      %p40 = scmp.ge.s32.totalorder %s39, 2
      %s41 = scalar_select %p40, 0, %s39
      %s42 = ssub.s32 %s30, %s37
      %p43 = scmp.eq.s32.totalorder %s42, 0
      %s45 = sadd.s32 %s44, 1
      %s46 = scalar_select %p43, %s44, %s45
      %p49 = pneg %p43
      %p50 = scmp.eq.s32.totalorder %s22, 5
      %p51 = por %p49, %p50
      %p52 = scmp.ne.s32.totalorder %s44, %s47
      %p53 = scmp.eq.s32.totalorder %s22, 0
      %p54 = por %p52, %p53
      %p55 = scmp.ne.s32.totalorder %s44, %s47
      %p56 = scmp.eq.s32.totalorder %s27, 5
      %p57 = por %p55, %p56
      %p58 = scmp.ne.s32.totalorder %s47, %s48
      %p59 = scmp.eq.s32.totalorder %s27, 0
      %p60 = por %p58, %p59
      %p61 = scmp.ne.s32.totalorder %s47, %s48
      %p62 = scmp.eq.s32.totalorder %s28, 5
      %p63 = por %p61, %p62
      %p65 = scmp.ne.s32.totalorder %s48, %s64
      %p66 = scmp.eq.s32.totalorder %s28, 0
      %p67 = por %p65, %p66
      %s68 = ssub.s32 %s30, %s37
      %p69 = scmp.eq.s32.totalorder %s68, 0
      %s71 = sadd.s32 %s70, 1
      %s72 = scalar_select %p69, %s70, %s71
      %p75 = pneg %p69
      %p76 = scmp.eq.s32.totalorder %s22, 5
      %p77 = por %p75, %p76
      %p78 = scmp.ne.s32.totalorder %s70, %s73
      %p79 = scmp.eq.s32.totalorder %s22, 0
      %p80 = por %p78, %p79
      %p81 = scmp.ne.s32.totalorder %s70, %s73
      %p82 = scmp.eq.s32.totalorder %s27, 5
      %p83 = por %p81, %p82
      %p84 = scmp.ne.s32.totalorder %s73, %s74
      %p85 = scmp.eq.s32.totalorder %s27, 0
      %p86 = por %p84, %p85
      %p87 = scmp.ne.s32.totalorder %s73, %s74
      %p88 = scmp.eq.s32.totalorder %s28, 5
      %p89 = por %p87, %p88
      %p91 = scmp.ne.s32.totalorder %s74, %s90
      %p92 = scmp.eq.s32.totalorder %s28, 0
      %p93 = por %p91, %p92
      %s94 = ssub.s32 %s30, %s37
      %p95 = scmp.eq.s32.totalorder %s94, 0
      %s97 = sadd.s32 %s96, 1
      %s98 = scalar_select %p95, %s96, %s97
      %p101 = pneg %p95
      %p102 = scmp.eq.s32.totalorder %s22, 5
      %p103 = por %p101, %p102
      %p104 = scmp.ne.s32.totalorder %s96, %s99
      %p105 = scmp.eq.s32.totalorder %s22, 0
      %p106 = por %p104, %p105
      %p107 = scmp.ne.s32.totalorder %s96, %s99
      %p108 = scmp.eq.s32.totalorder %s27, 5
      %p109 = por %p107, %p108
      %p110 = scmp.ne.s32.totalorder %s99, %s100
      %p111 = scmp.eq.s32.totalorder %s27, 0
      %p112 = por %p110, %p111
      %p113 = scmp.ne.s32.totalorder %s99, %s100
      %p114 = scmp.eq.s32.totalorder %s28, 5
      %p115 = por %p113, %p114
      %p117 = scmp.ne.s32.totalorder %s100, %s116
      %p118 = scmp.eq.s32.totalorder %s28, 0
      %p119 = por %p117, %p118
      %s121 = sadd.s32 %s120, 1
      %p124 = scmp.eq.s32.totalorder %s22, 5
      %p125 = scmp.ne.s32.totalorder %s120, %s122
      %p126 = scmp.eq.s32.totalorder %s22, 0
      %p127 = por %p125, %p126
      %p128 = scmp.ne.s32.totalorder %s120, %s122
      %p129 = scmp.eq.s32.totalorder %s27, 5
      %p130 = por %p128, %p129
      %p131 = scmp.ne.s32.totalorder %s122, %s123
      %p132 = scmp.eq.s32.totalorder %s27, 0
      %p133 = por %p131, %p132
      %p134 = scmp.ne.s32.totalorder %s122, %s123
      %p135 = scmp.eq.s32.totalorder %s28, 5
      %p136 = por %p134, %p135
      %p138 = scmp.ne.s32.totalorder %s123, %s137
      %p139 = scmp.eq.s32.totalorder %s28, 0
      %p140 = por %p138, %p139
      %s141 = ssub.s32 %s30, %s37
      %p142 = scmp.eq.s32.totalorder %s141, 0
      %s144 = sadd.s32 %s143, 1
      %s145 = scalar_select %p142, %s143, %s144
      %p148 = pneg %p142
      %p149 = scmp.eq.s32.totalorder %s22, 5
      %p150 = por %p148, %p149
      %p151 = scmp.ne.s32.totalorder %s143, %s146
      %p152 = scmp.eq.s32.totalorder %s22, 0
      %p153 = por %p151, %p152
      %p154 = scmp.ne.s32.totalorder %s143, %s146
      %p155 = scmp.eq.s32.totalorder %s27, 5
      %p156 = por %p154, %p155
      %p157 = scmp.ne.s32.totalorder %s146, %s147
      %p158 = scmp.eq.s32.totalorder %s27, 0
      %p159 = por %p157, %p158
      %p160 = scmp.ne.s32.totalorder %s146, %s147
      %p161 = scmp.eq.s32.totalorder %s28, 5
      %p162 = por %p160, %p161
      %p164 = scmp.ne.s32.totalorder %s147, %s163
      %p165 = scmp.eq.s32.totalorder %s28, 0
      %p166 = por %p164, %p165
      %s167 = ssub.s32 %s29, %s41
      %p168 = scmp.eq.s32.totalorder %s167, 0
      %s170 = sadd.s32 %s169, 1
      %s171 = scalar_select %p168, %s169, %s170
      %p174 = pneg %p168
      %p175 = scmp.eq.s32.totalorder %s22, 5
      %p176 = por %p174, %p175
      %p177 = scmp.ne.s32.totalorder %s169, %s172
      %p178 = scmp.eq.s32.totalorder %s22, 0
      %p179 = por %p177, %p178
      %p180 = scmp.ne.s32.totalorder %s169, %s172
      %p181 = scmp.eq.s32.totalorder %s27, 5
      %p182 = por %p180, %p181
      %p183 = scmp.ne.s32.totalorder %s172, %s173
      %p184 = scmp.eq.s32.totalorder %s27, 0
      %p185 = por %p183, %p184
      %p186 = scmp.ne.s32.totalorder %s172, %s173
      %p187 = scmp.eq.s32.totalorder %s28, 5
      %p188 = por %p186, %p187
      %p190 = scmp.ne.s32.totalorder %s173, %s189
      %p191 = scmp.eq.s32.totalorder %s28, 0
      %p192 = por %p190, %p191
      %s193 = ssub.s32 %s29, %s41
      %p194 = scmp.eq.s32.totalorder %s193, 0
      %s196 = sadd.s32 %s195, 1
      %s197 = scalar_select %p194, %s195, %s196
      %p200 = pneg %p194
      %p201 = scmp.eq.s32.totalorder %s22, 5
      %p202 = por %p200, %p201
      %p203 = scmp.ne.s32.totalorder %s195, %s198
      %p204 = scmp.eq.s32.totalorder %s22, 0
      %p205 = por %p203, %p204
      %p206 = scmp.ne.s32.totalorder %s195, %s198
      %p207 = scmp.eq.s32.totalorder %s27, 5
      %p208 = por %p206, %p207
      %p209 = scmp.ne.s32.totalorder %s198, %s199
      %p210 = scmp.eq.s32.totalorder %s27, 0
      %p211 = por %p209, %p210
      %p212 = scmp.ne.s32.totalorder %s198, %s199
      %p213 = scmp.eq.s32.totalorder %s28, 5
      %p214 = por %p212, %p213
      %p216 = scmp.ne.s32.totalorder %s199, %s215
      %p217 = scmp.eq.s32.totalorder %s28, 0
      %p218 = por %p216, %p217
      %s219 = ssub.s32 %s29, %s41
      %p220 = scmp.eq.s32.totalorder %s219, 0
      %s222 = sadd.s32 %s221, 1
      %s223 = scalar_select %p220, %s221, %s222
      %p226 = pneg %p220
      %p227 = scmp.eq.s32.totalorder %s22, 5
      %p228 = por %p226, %p227
      %p229 = scmp.ne.s32.totalorder %s221, %s224
      %p230 = scmp.eq.s32.totalorder %s22, 0
      %p231 = por %p229, %p230
      %p232 = scmp.ne.s32.totalorder %s221, %s224
      %p233 = scmp.eq.s32.totalorder %s27, 5
      %p234 = por %p232, %p233
      %p235 = scmp.ne.s32.totalorder %s224, %s225
      %p236 = scmp.eq.s32.totalorder %s27, 0
      %p237 = por %p235, %p236
      %p238 = scmp.ne.s32.totalorder %s224, %s225
      %p239 = scmp.eq.s32.totalorder %s28, 5
      %p240 = por %p238, %p239
      %p242 = scmp.ne.s32.totalorder %s225, %s241
      %p243 = scmp.eq.s32.totalorder %s28, 0
      %p244 = por %p242, %p243
      %s245 = ssub.s32 %s29, %s41
      %p246 = scmp.eq.s32.totalorder %s245, 0
      %s248 = sadd.s32 %s247, 1
      %s249 = scalar_select %p246, %s247, %s248
      %p252 = pneg %p246
      %p253 = scmp.eq.s32.totalorder %s22, 5
      %p254 = por %p252, %p253
      %p255 = scmp.ne.s32.totalorder %s247, %s250
      %p256 = scmp.eq.s32.totalorder %s22, 0
      %p257 = por %p255, %p256
      %p258 = scmp.ne.s32.totalorder %s247, %s250
      %p259 = scmp.eq.s32.totalorder %s27, 5
      %p260 = por %p258, %p259
      %p261 = scmp.ne.s32.totalorder %s250, %s251
      %p262 = scmp.eq.s32.totalorder %s27, 0
      %p263 = por %p261, %p262
      %p264 = scmp.ne.s32.totalorder %s250, %s251
      %p265 = scmp.eq.s32.totalorder %s28, 5
      %p266 = por %p264, %p265
      %p268 = scmp.ne.s32.totalorder %s251, %s267
      %p269 = scmp.eq.s32.totalorder %s28, 0
      %p270 = por %p268, %p269
      %s271 = ssub.s32 %s29, %s41
      %p272 = scmp.eq.s32.totalorder %s271, 0
      %s274 = sadd.s32 %s273, 1
      %s275 = scalar_select %p272, %s273, %s274
      %p278 = pneg %p272
      %p279 = scmp.eq.s32.totalorder %s22, 5
      %p280 = por %p278, %p279
      %p281 = scmp.ne.s32.totalorder %s273, %s276
      %p282 = scmp.eq.s32.totalorder %s22, 0
      %p283 = por %p281, %p282
      %p284 = scmp.ne.s32.totalorder %s273, %s276
      %p285 = scmp.eq.s32.totalorder %s27, 5
      %p286 = por %p284, %p285
      %p287 = scmp.ne.s32.totalorder %s276, %s277
      %p288 = scmp.eq.s32.totalorder %s27, 0
      %p289 = por %p287, %p288
      %p290 = scmp.ne.s32.totalorder %s276, %s277
      %p291 = scmp.eq.s32.totalorder %s28, 5
      %p292 = por %p290, %p291
      %p294 = scmp.ne.s32.totalorder %s277, %s293
      %p295 = scmp.eq.s32.totalorder %s28, 0
      %p296 = por %p294, %p295
      %p297 = scmp.le.s32.totalorder 1, %s22
      %p298 = scmp.lt.s32.totalorder %s22, 7
      %p299 = pnand %p297, %p298
      %p300 = pneg %p299
      // Predicated region
      $region9: #{tpu_custom_call.1} parent=5 // pred_check
        _
      $region10: #{tpu_custom_call.1} parent=5 // pred_check_branch
        %302 = sbr.rel (%p299) target = $region12
      $region11: #{tpu_custom_call.1} parent=5 // pred_region
        %s303 = ssub.s32 %s22, 1
        // Predicated region
        $region13: #{tpu_custom_call.1} parent=11 // pred_check
          %p304 = pneg %p133
        $region14: #{tpu_custom_call.1} parent=11 // pred_check_branch
          %306 = sbr.rel (%p304) target = $region16
        $region15: #{tpu_custom_call.1} parent=11 // pred_region
          %s308 = ssub.s32 1024, 1024
          %309 = vsyncadd [#allocation5], %s308
          %s310 = sshll.u32 [#allocation4], 4
          %s311 = int_to_ptr.vmem [resolvable:$true] %s310
          %316 = dma.hbm_to_vmem [thread:$0]  %s3, 1024, %s311, [#allocation5], 256, 256, 16
        $region16: #{tpu_custom_call.1} parent=11 // pred_fallthru
          _
      $region12: #{tpu_custom_call.1} parent=5 // pred_fallthru
        _
      %p317 = scmp.lt.s32.totalorder %s22, 6
      // Predicated region
      $region17: #{tpu_custom_call.1} parent=5 // pred_check
        %p318 = pneg %p317
      $region18: #{tpu_custom_call.1} parent=5 // pred_check_branch
        %320 = sbr.rel (%p318) target = $region20
      $region19: #{tpu_custom_call.1} parent=5 // pred_region
        // Predicated region
        $region21: #{tpu_custom_call.1} parent=19 // pred_check
          %p321 = pneg %p54
        $region22: #{tpu_custom_call.1} parent=19 // pred_check_branch
          %323 = sbr.rel (%p321) target = $region24
        $region23: #{tpu_custom_call.1} parent=19 // pred_region
          %s324 = smul.u32 32, %s30
          %p325 = scmp.lt.s32.totalorder %s324, 95
          %s326 = scalar_select %p325, %s324, 95
          %s327 = smul.addr %s326, 8
          %s328 = scalar_lea.vmem %s0, %s327
          %s329 = smul.u32 32, %s30
        $region24: #{tpu_custom_call.1} parent=19 // pred_fallthru
          _
        // Predicated region
        $region25: #{tpu_custom_call.1} parent=19 // pred_check
          %p330 = pneg %p80
        $region26: #{tpu_custom_call.1} parent=19 // pred_check_branch
          %332 = sbr.rel (%p330) target = $region28
        $region27: #{tpu_custom_call.1} parent=19 // pred_region
          %s333 = smul.u32 32, %s30
          %p334 = scmp.lt.s32.totalorder %s333, 95
          %s335 = scalar_select %p334, %s333, 95
          %s336 = smul.addr %s335, 8
          %s337 = scalar_lea.vmem %s1, %s336
          %s338 = smul.u32 32, %s30
        $region28: #{tpu_custom_call.1} parent=19 // pred_fallthru
          _
        // Predicated region
        $region29: #{tpu_custom_call.1} parent=19 // pred_check
          %p339 = pneg %p106
        $region30: #{tpu_custom_call.1} parent=19 // pred_check_branch
          %341 = sbr.rel (%p339) target = $region32
        $region31: #{tpu_custom_call.1} parent=19 // pred_region
          %s342 = smul.u32 2, %s30
          %p343 = scmp.lt.s32.totalorder %s342, 5
          %s344 = scalar_select %p343, %s342, 5
          %s345 = scalar_lea.vmem %s2, %s344
          %s346 = smul.u32 2, %s30
        $region32: #{tpu_custom_call.1} parent=19 // pred_fallthru
          _
        // Predicated region
        $region33: #{tpu_custom_call.1} parent=19 // pred_check
          %p347 = pneg %p153
        $region34: #{tpu_custom_call.1} parent=19 // pred_check_branch
          %349 = sbr.rel (%p347) target = $region36
        $region35: #{tpu_custom_call.1} parent=19 // pred_region
          %s350 = smul.u32 32, %s30
          %p351 = scmp.lt.s32.totalorder %s350, 95
          %s352 = scalar_select %p351, %s350, 95
          %s353 = smul.addr %s352, 2
          %s354 = smul.addr %s353, 8
          %s355 = scalar_lea.vmem %s4, %s354
          %s356 = smul.u32 32, %s30
        $region36: #{tpu_custom_call.1} parent=19 // pred_fallthru
          _
        // Predicated region
        $region37: #{tpu_custom_call.1} parent=19 // pred_check
          %p357 = pneg %p179
        $region38: #{tpu_custom_call.1} parent=19 // pred_check_branch
          %359 = sbr.rel (%p357) target = $region40
        $region39: #{tpu_custom_call.1} parent=19 // pred_region
          %s360 = sand.u32 %s22, 1
          %s361 = scalar_lea.sflag [#allocation8], %s360
          %s362 = sand.u32 %s169, 1
          %s363 = smul.addr %s362, 1024
          %s364 = scalar_lea.vmem [#allocation7], %s363
          %s365 = smul.u32 4, %s29
          %s367 = ssub.s32 16384, 16384
          %368 = vsyncadd %s361, %s367
          %s369 = smul.addr %s365, 128
          %s370 = scalar_lea.hbm %s5, %s369
          %s371 = sshll.u32 %s364, 4
          %s372 = int_to_ptr.vmem [resolvable:$true] %s371
          %377 = dma.hbm_to_vmem [thread:$0]  %s370, 16384, %s372, %s361, 1024, 512, 32
        $region40: #{tpu_custom_call.1} parent=19 // pred_fallthru
          _
        // Predicated region
        $region41: #{tpu_custom_call.1} parent=19 // pred_check
          %p378 = pneg %p205
        $region42: #{tpu_custom_call.1} parent=19 // pred_check_branch
          %380 = sbr.rel (%p378) target = $region44
        $region43: #{tpu_custom_call.1} parent=19 // pred_region
          %s381 = smul.u32 4, %s29
          %p382 = scmp.lt.s32.totalorder %s381, 7
          %s383 = scalar_select %p382, %s381, 7
          %s384 = scalar_lea.vmem %s6, %s383
          %s385 = smul.u32 4, %s29
        $region44: #{tpu_custom_call.1} parent=19 // pred_fallthru
          _
        // Predicated region
        $region45: #{tpu_custom_call.1} parent=19 // pred_check
          %p386 = pneg %p231
        $region46: #{tpu_custom_call.1} parent=19 // pred_check_branch
          %388 = sbr.rel (%p386) target = $region48
        $region47: #{tpu_custom_call.1} parent=19 // pred_region
          %s389 = sand.u32 %s22, 1
          %s390 = scalar_lea.sflag [#allocation8], %s389
          %s391 = sand.u32 %s221, 1
          %s392 = smul.addr %s391, 256
          %s393 = scalar_lea.vmem [#allocation9], %s392
          %s395 = ssub.s32 4096, 4096
          %396 = vsyncadd %s390, %s395
          %s397 = smul.addr %s29, 128
          %s398 = scalar_lea.hbm %s7, %s397
          %s399 = sshll.u32 %s393, 4
          %s400 = int_to_ptr.vmem [resolvable:$true] %s399
          %405 = dma.hbm_to_vmem [thread:$0]  %s398, 4096, %s400, %s390, 256, 128, 8
        $region48: #{tpu_custom_call.1} parent=19 // pred_fallthru
          _
        // Predicated region
        $region49: #{tpu_custom_call.1} parent=19 // pred_check
          %p406 = pneg %p257
        $region50: #{tpu_custom_call.1} parent=19 // pred_check_branch
          %408 = sbr.rel (%p406) target = $region52
        $region51: #{tpu_custom_call.1} parent=19 // pred_region
          %p409 = scmp.lt.s32.totalorder %s29, 1
          %s410 = scalar_select %p409, %s29, 1
          %s411 = scalar_lea.vmem %s8, %s410
        $region52: #{tpu_custom_call.1} parent=19 // pred_fallthru
          _
      $region20: #{tpu_custom_call.1} parent=5 // pred_fallthru
        _
      %p412 = scmp.le.s32.totalorder 1, %s22
      %p413 = scmp.lt.s32.totalorder %s22, 7
      %p414 = pnand %p412, %p413
      %p415 = pneg %p414
      // Predicated region
      $region53: #{tpu_custom_call.1} parent=5 // pred_check
        _
      $region54: #{tpu_custom_call.1} parent=5 // pred_check_branch
        %417 = sbr.rel (%p414) target = $region56
      $region55: #{tpu_custom_call.1} parent=5 // pred_region
        %s418 = ssub.s32 %s22, 1
        // Predicated region
        $region57: #{tpu_custom_call.1} parent=55 // pred_check
          %p419 = pneg %p133
        $region58: #{tpu_custom_call.1} parent=55 // pred_check_branch
          %421 = sbr.rel (%p419) target = $region60
        $region59: #{tpu_custom_call.1} parent=55 // pred_region
          %422 = dma.done [#allocation5], 1024
        $region60: #{tpu_custom_call.1} parent=55 // pred_fallthru
          _
        %s423 = sand.u32 %s27, 1
        %s424 = scalar_lea.sflag [#allocation8], %s423
        %s425 = sand.u32 %s172, 1
        %s426 = smul.addr %s425, 1024
        %s427 = scalar_lea.vmem [#allocation7], %s426
        // Predicated region
        $region61: #{tpu_custom_call.1} parent=55 // pred_check
          %p428 = pneg %p185
        $region62: #{tpu_custom_call.1} parent=55 // pred_check_branch
          %430 = sbr.rel (%p428) target = $region64
        $region63: #{tpu_custom_call.1} parent=55 // pred_region
          %431 = dma.done %s424, 16384
        $region64: #{tpu_custom_call.1} parent=55 // pred_fallthru
          _
        %s432 = sand.u32 %s27, 1
        %s433 = scalar_lea.sflag [#allocation8], %s432
        %s434 = sand.u32 %s224, 1
        %s435 = smul.addr %s434, 256
        %s436 = scalar_lea.vmem [#allocation9], %s435
        // Predicated region
        $region65: #{tpu_custom_call.1} parent=55 // pred_check
          %p437 = pneg %p237
        $region66: #{tpu_custom_call.1} parent=55 // pred_check_branch
          %439 = sbr.rel (%p437) target = $region68
        $region67: #{tpu_custom_call.1} parent=55 // pred_region
          %440 = dma.done %s433, 4096
        $region68: #{tpu_custom_call.1} parent=55 // pred_fallthru
          _
        %s441 = smul.u32 32, %s32
        %p442 = scmp.lt.s32.totalorder %s441, 95
        %s443 = scalar_select %p442, %s441, 95
        %s444 = smul.addr %s443, 8
        %s445 = scalar_lea.vmem %s0, %s444
        %p446 = pneg %p60
        %p447 = pneg %p57
        %s448 = smul.u32 32, %s32
        %p449 = scmp.lt.s32.totalorder %s448, 95
        %s450 = scalar_select %p449, %s448, 95
        %s451 = smul.addr %s450, 8
        %s452 = scalar_lea.vmem %s1, %s451
        %p453 = pneg %p86
        %p454 = pneg %p83
        %s455 = smul.u32 2, %s32
        %p456 = scmp.lt.s32.totalorder %s455, 5
        %s457 = scalar_select %p456, %s455, 5
        %s458 = scalar_lea.vmem %s2, %s457
        %p459 = pneg %p112
        %p460 = pneg %p109
        %p461 = pneg %p133
        %p462 = pneg %p130
        %s463 = smul.u32 32, %s32
        %p464 = scmp.lt.s32.totalorder %s463, 95
        %s465 = scalar_select %p464, %s463, 95
        %s466 = smul.addr %s465, 2
        %s467 = smul.addr %s466, 8
        %s468 = scalar_lea.vmem %s4, %s467
        %p469 = pneg %p159
        %p470 = pneg %p156
        %s471 = sand.u32 %s27, 1
        %s472 = scalar_lea.sflag [#allocation8], %s471
        %s473 = sand.u32 %s172, 1
        %s474 = smul.addr %s473, 1024
        %s475 = scalar_lea.vmem [#allocation7], %s474
        %p476 = pneg %p185
        %p477 = pneg %p182
        %s478 = smul.u32 4, %s31
        %p479 = scmp.lt.s32.totalorder %s478, 7
        %s480 = scalar_select %p479, %s478, 7
        %s481 = scalar_lea.vmem %s6, %s480
        %p482 = pneg %p211
        %p483 = pneg %p208
        %s484 = sand.u32 %s27, 1
        %s485 = scalar_lea.sflag [#allocation8], %s484
        %s486 = sand.u32 %s224, 1
        %s487 = smul.addr %s486, 256
        %s488 = scalar_lea.vmem [#allocation9], %s487
        %p489 = pneg %p237
        %p490 = pneg %p234
        %p491 = scmp.lt.s32.totalorder %s31, 1
        %s492 = scalar_select %p491, %s31, 1
        %s493 = scalar_lea.vmem %s8, %s492
        %p494 = pneg %p263
        %p495 = pneg %p260
        %p496 = pneg %p289
        %p497 = pneg %p286
        %s498 = sand.u32 %s276, 1
        %s499 = scalar_lea.sflag [#allocation6], %s498
        %s500 = sand.u32 %s276, 1
        %s501 = smul.addr %s500, 32
        %s502 = scalar_lea.vmem [#allocation10], %s501
        %s503 = smul.u32 32, %s32
        %p504 = scmp.lt.s32.totalorder %s503, 95
        %s505 = scalar_select %p504, %s503, 95
        %s506 = smul.addr %s505, 8
        %s507 = scalar_lea.vmem %s0, %s506
        %s508 = smul.u32 32, %s32
        %s509 = smul.u32 32, %s32
        %p510 = scmp.lt.s32.totalorder %s509, 95
        %s511 = scalar_select %p510, %s509, 95
        %s512 = smul.addr %s511, 8
        %s513 = scalar_lea.vmem %s1, %s512
        %s514 = smul.u32 32, %s32
        %s515 = smul.u32 2, %s32
        %p516 = scmp.lt.s32.totalorder %s515, 5
        %s517 = scalar_select %p516, %s515, 5
        %s518 = scalar_lea.vmem %s2, %s517
        %s519 = smul.u32 2, %s32
        %s520 = smul.u32 32, %s32
        %p521 = scmp.lt.s32.totalorder %s520, 95
        %s522 = scalar_select %p521, %s520, 95
        %s523 = smul.addr %s522, 2
        %s524 = smul.addr %s523, 8
        %s525 = scalar_lea.vmem %s4, %s524
        %s526 = smul.u32 32, %s32
        %s527 = smul.u32 4, %s31
        %s528 = smul.u32 4, %s31
        %p529 = scmp.lt.s32.totalorder %s528, 7
        %s530 = scalar_select %p529, %s528, 7
        %s531 = scalar_lea.vmem %s6, %s530
        %s532 = smul.u32 4, %s31
        %p533 = scmp.lt.s32.totalorder %s31, 1
        %s534 = scalar_select %p533, %s31, 1
        %s535 = scalar_lea.vmem %s8, %s534
        %p536 = scmp.eq.s32.totalorder %s32, 0
        // Predicated region
        $region69: #{tpu_custom_call.1} parent=55 // pred_check
          %p537 = pneg %p536
        $region70: #{tpu_custom_call.1} parent=55 // pred_check_branch
          %539 = sbr.rel (%p537) target = $region72
        $region71: #{tpu_custom_call.1} parent=55 // pred_region
          %v540 = vld [vmem:[#allocation4] sm:$0xff]
          %v541 = vld [vmem:[#allocation4 + $0x8] sm:$0xff]
          %v542 = vld [vmem:[#allocation4 + $0x10] sm:$0xff]
          %v543 = vld [vmem:[#allocation4 + $0x18] sm:$0xff]
          %v544 = vld [vmem:[#allocation4 + $0x20] sm:$0xff]
          %v545 = vld [vmem:[#allocation4 + $0x28] sm:$0xff]
          %v546 = vld [vmem:[#allocation4 + $0x30] sm:$0xff]
          %v547 = vld [vmem:[#allocation4 + $0x38] sm:$0xff]
          %v548 = vld [vmem:[%s427] sm:$0xff]
          %v549 = vld [vmem:[%s427 + $0x8] sm:$0xff]
          %v550 = vld [vmem:[%s427 + $0x10] sm:$0xff]
          %v551 = vld [vmem:[%s427 + $0x18] sm:$0xff]
          %v552 = vld [vmem:[%s427 + $0x20] sm:$0xff]
          %v553 = vld [vmem:[%s427 + $0x28] sm:$0xff]
          %v554 = vld [vmem:[%s427 + $0x30] sm:$0xff]
          %v555 = vld [vmem:[%s427 + $0x38] sm:$0xff]
          %v556 = vld [vmem:[%s427 + $0x40] sm:$0xff]
          %v557 = vld [vmem:[%s427 + $0x48] sm:$0xff]
          %v558 = vld [vmem:[%s427 + $0x50] sm:$0xff]
          %v559 = vld [vmem:[%s427 + $0x58] sm:$0xff]
          %v560 = vld [vmem:[%s427 + $0x60] sm:$0xff]
          %v561 = vld [vmem:[%s427 + $0x68] sm:$0xff]
          %v562 = vld [vmem:[%s427 + $0x70] sm:$0xff]
          %v563 = vld [vmem:[%s427 + $0x78] sm:$0xff]
          %v564 = vld [vmem:[%s427 + $0x80] sm:$0xff]
          %v565 = vld [vmem:[%s427 + $0x88] sm:$0xff]
          %v566 = vld [vmem:[%s427 + $0x90] sm:$0xff]
          %v567 = vld [vmem:[%s427 + $0x98] sm:$0xff]
          %v568 = vld [vmem:[%s427 + $0xa0] sm:$0xff]
          %v569 = vld [vmem:[%s427 + $0xa8] sm:$0xff]
          %v570 = vld [vmem:[%s427 + $0xb0] sm:$0xff]
          %v571 = vld [vmem:[%s427 + $0xb8] sm:$0xff]
          %v572 = vld [vmem:[%s427 + $0xc0] sm:$0xff]
          %v573 = vld [vmem:[%s427 + $0xc8] sm:$0xff]
          %v574 = vld [vmem:[%s427 + $0xd0] sm:$0xff]
          %v575 = vld [vmem:[%s427 + $0xd8] sm:$0xff]
          %v576 = vld [vmem:[%s427 + $0xe0] sm:$0xff]
          %v577 = vld [vmem:[%s427 + $0xe8] sm:$0xff]
          %v578 = vld [vmem:[%s427 + $0xf0] sm:$0xff]
          %v579 = vld [vmem:[%s427 + $0xf8] sm:$0xff]
          %v580 = vld [vmem:[%s427 + $0x100] sm:$0xff]
          %v581 = vld [vmem:[%s427 + $0x108] sm:$0xff]
          %v582 = vld [vmem:[%s427 + $0x110] sm:$0xff]
          %v583 = vld [vmem:[%s427 + $0x118] sm:$0xff]
          %v584 = vld [vmem:[%s427 + $0x120] sm:$0xff]
          %v585 = vld [vmem:[%s427 + $0x128] sm:$0xff]
          %v586 = vld [vmem:[%s427 + $0x130] sm:$0xff]
          %v587 = vld [vmem:[%s427 + $0x138] sm:$0xff]
          %v588 = vld [vmem:[%s427 + $0x140] sm:$0xff]
          %v589 = vld [vmem:[%s427 + $0x148] sm:$0xff]
          %v590 = vld [vmem:[%s427 + $0x150] sm:$0xff]
          %v591 = vld [vmem:[%s427 + $0x158] sm:$0xff]
          %v592 = vld [vmem:[%s427 + $0x160] sm:$0xff]
          %v593 = vld [vmem:[%s427 + $0x168] sm:$0xff]
          %v594 = vld [vmem:[%s427 + $0x170] sm:$0xff]
          %v595 = vld [vmem:[%s427 + $0x178] sm:$0xff]
          %v596 = vld [vmem:[%s427 + $0x180] sm:$0xff]
          %v597 = vld [vmem:[%s427 + $0x188] sm:$0xff]
          %v598 = vld [vmem:[%s427 + $0x190] sm:$0xff]
          %v599 = vld [vmem:[%s427 + $0x198] sm:$0xff]
          %v600 = vld [vmem:[%s427 + $0x1a0] sm:$0xff]
          %v601 = vld [vmem:[%s427 + $0x1a8] sm:$0xff]
          %v602 = vld [vmem:[%s427 + $0x1b0] sm:$0xff]
          %v603 = vld [vmem:[%s427 + $0x1b8] sm:$0xff]
          %v604 = vld [vmem:[%s427 + $0x1c0] sm:$0xff]
          %v605 = vld [vmem:[%s427 + $0x1c8] sm:$0xff]
          %v606 = vld [vmem:[%s427 + $0x1d0] sm:$0xff]
          %v607 = vld [vmem:[%s427 + $0x1d8] sm:$0xff]
          %v608 = vld [vmem:[%s427 + $0x1e0] sm:$0xff]
          %v609 = vld [vmem:[%s427 + $0x1e8] sm:$0xff]
          %v610 = vld [vmem:[%s427 + $0x1f0] sm:$0xff]
          %v611 = vld [vmem:[%s427 + $0x1f8] sm:$0xff]
          %v612 = vld [vmem:[%s427 + $0x200] sm:$0xff]
          %v613 = vld [vmem:[%s427 + $0x208] sm:$0xff]
          %v614 = vld [vmem:[%s427 + $0x210] sm:$0xff]
          %v615 = vld [vmem:[%s427 + $0x218] sm:$0xff]
          %v616 = vld [vmem:[%s427 + $0x220] sm:$0xff]
          %v617 = vld [vmem:[%s427 + $0x228] sm:$0xff]
          %v618 = vld [vmem:[%s427 + $0x230] sm:$0xff]
          %v619 = vld [vmem:[%s427 + $0x238] sm:$0xff]
          %v620 = vld [vmem:[%s427 + $0x240] sm:$0xff]
          %v621 = vld [vmem:[%s427 + $0x248] sm:$0xff]
          %v622 = vld [vmem:[%s427 + $0x250] sm:$0xff]
          %v623 = vld [vmem:[%s427 + $0x258] sm:$0xff]
          %v624 = vld [vmem:[%s427 + $0x260] sm:$0xff]
          %v625 = vld [vmem:[%s427 + $0x268] sm:$0xff]
          %v626 = vld [vmem:[%s427 + $0x270] sm:$0xff]
          %v627 = vld [vmem:[%s427 + $0x278] sm:$0xff]
          %v628 = vld [vmem:[%s427 + $0x280] sm:$0xff]
          %v629 = vld [vmem:[%s427 + $0x288] sm:$0xff]
          %v630 = vld [vmem:[%s427 + $0x290] sm:$0xff]
          %v631 = vld [vmem:[%s427 + $0x298] sm:$0xff]
          %v632 = vld [vmem:[%s427 + $0x2a0] sm:$0xff]
          %v633 = vld [vmem:[%s427 + $0x2a8] sm:$0xff]
          %v634 = vld [vmem:[%s427 + $0x2b0] sm:$0xff]
          %v635 = vld [vmem:[%s427 + $0x2b8] sm:$0xff]
          %v636 = vld [vmem:[%s427 + $0x2c0] sm:$0xff]
          %v637 = vld [vmem:[%s427 + $0x2c8] sm:$0xff]
          %v638 = vld [vmem:[%s427 + $0x2d0] sm:$0xff]
          %v639 = vld [vmem:[%s427 + $0x2d8] sm:$0xff]
          %v640 = vld [vmem:[%s427 + $0x2e0] sm:$0xff]
          %v641 = vld [vmem:[%s427 + $0x2e8] sm:$0xff]
          %v642 = vld [vmem:[%s427 + $0x2f0] sm:$0xff]
          %v643 = vld [vmem:[%s427 + $0x2f8] sm:$0xff]
          %v644 = vld [vmem:[%s427 + $0x300] sm:$0xff]
          %v645 = vld [vmem:[%s427 + $0x308] sm:$0xff]
          %v646 = vld [vmem:[%s427 + $0x310] sm:$0xff]
          %v647 = vld [vmem:[%s427 + $0x318] sm:$0xff]
          %v648 = vld [vmem:[%s427 + $0x320] sm:$0xff]
          %v649 = vld [vmem:[%s427 + $0x328] sm:$0xff]
          %v650 = vld [vmem:[%s427 + $0x330] sm:$0xff]
          %v651 = vld [vmem:[%s427 + $0x338] sm:$0xff]
          %v652 = vld [vmem:[%s427 + $0x340] sm:$0xff]
          %v653 = vld [vmem:[%s427 + $0x348] sm:$0xff]
          %v654 = vld [vmem:[%s427 + $0x350] sm:$0xff]
          %v655 = vld [vmem:[%s427 + $0x358] sm:$0xff]
          %v656 = vld [vmem:[%s427 + $0x360] sm:$0xff]
          %v657 = vld [vmem:[%s427 + $0x368] sm:$0xff]
          %v658 = vld [vmem:[%s427 + $0x370] sm:$0xff]
          %v659 = vld [vmem:[%s427 + $0x378] sm:$0xff]
          %v660 = vld [vmem:[%s427 + $0x380] sm:$0xff]
          %v661 = vld [vmem:[%s427 + $0x388] sm:$0xff]
          %v662 = vld [vmem:[%s427 + $0x390] sm:$0xff]
          %v663 = vld [vmem:[%s427 + $0x398] sm:$0xff]
          %v664 = vld [vmem:[%s427 + $0x3a0] sm:$0xff]
          %v665 = vld [vmem:[%s427 + $0x3a8] sm:$0xff]
          %v666 = vld [vmem:[%s427 + $0x3b0] sm:$0xff]
          %v667 = vld [vmem:[%s427 + $0x3b8] sm:$0xff]
          %v668 = vld [vmem:[%s427 + $0x3c0] sm:$0xff]
          %v669 = vld [vmem:[%s427 + $0x3c8] sm:$0xff]
          %v670 = vld [vmem:[%s427 + $0x3d0] sm:$0xff]
          %v671 = vld [vmem:[%s427 + $0x3d8] sm:$0xff]
          %v672 = vld [vmem:[%s427 + $0x3e0] sm:$0xff]
          %v673 = vld [vmem:[%s427 + $0x3e8] sm:$0xff]
          %v674 = vld [vmem:[%s427 + $0x3f0] sm:$0xff]
          %v675 = vld [vmem:[%s427 + $0x3f8] sm:$0xff]
          %v676 = vld [vmem:[%s531] sm:$0xf]
          %v678 = vlaneseq
          %v679 = vshrl.u32 %v678, 7
          %v680 = vsub.s32 0, %v679
          %v681 = vrot.slane %v676, %v680
          %v682 = vlaneseq
          %v683 = vshrl.u32 %v682, 7
          %v684 = vsub.s32 1, %v683
          %v685 = vrot.slane %v676, %v684
          %v686 = vlaneseq
          %v687 = vshrl.u32 %v686, 7
          %v688 = vsub.s32 2, %v687
          %v689 = vrot.slane %v676, %v688
          %v690 = vlaneseq
          %v691 = vshrl.u32 %v690, 7
          %v692 = vsub.s32 3, %v691
          %v693 = vrot.slane %v676, %v692
          %698 = vmatprep.subr.mxu0 %v549
          %699 = vmatpush1.msra.mxu0 %v548
          %700 = vmatprep.subr.mxu0 %v553
          %701 = vmatpush1.msra.mxu0 %v552
          %702 = vmatprep.subr.mxu0 %v557
          %703 = vmatpush1.msra.mxu0 %v556
          %704 = vmatprep.subr.mxu0 %v561
          %705 = vmatpush1.msra.mxu0 %v560
          %706 = vmatprep.subr.mxu0 %v565
          %707 = vmatpush1.msra.mxu0 %v564
          %708 = vmatprep.subr.mxu0 %v569
          %709 = vmatpush1.msra.mxu0 %v568
          %710 = vmatprep.subr.mxu0 %v573
          %711 = vmatpush1.msra.mxu0 %v572
          %712 = vmatprep.subr.mxu0 %v577
          %713 = vmatpush1.msra.mxu0 %v576
          %714 = vmatprep.subr.mxu0 %v581
          %715 = vmatpush1.msra.mxu0 %v580
          %716 = vmatprep.subr.mxu0 %v585
          %717 = vmatpush1.msra.mxu0 %v584
          %718 = vmatprep.subr.mxu0 %v589
          %719 = vmatpush1.msra.mxu0 %v588
          %720 = vmatprep.subr.mxu0 %v593
          %721 = vmatpush1.msra.mxu0 %v592
          %722 = vmatprep.subr.mxu0 %v597
          %723 = vmatpush1.msra.mxu0 %v596
          %724 = vmatprep.subr.mxu0 %v601
          %725 = vmatpush1.msra.mxu0 %v600
          %726 = vmatprep.subr.mxu0 %v605
          %727 = vmatpush1.msra.mxu0 %v604
          %728 = vmatprep.subr.mxu0 %v609
          %729 = vmatpush1.msra.mxu0 %v608
          %730 = vmatprep.subr.mxu0 %v613
          %731 = vmatpush1.msra.mxu0 %v612
          %732 = vmatprep.subr.mxu0 %v617
          %733 = vmatpush1.msra.mxu0 %v616
          %734 = vmatprep.subr.mxu0 %v621
          %735 = vmatpush1.msra.mxu0 %v620
          %736 = vmatprep.subr.mxu0 %v625
          %737 = vmatpush1.msra.mxu0 %v624
          %738 = vmatprep.subr.mxu0 %v629
          %739 = vmatpush1.msra.mxu0 %v628
          %740 = vmatprep.subr.mxu0 %v633
          %741 = vmatpush1.msra.mxu0 %v632
          %742 = vmatprep.subr.mxu0 %v637
          %743 = vmatpush1.msra.mxu0 %v636
          %744 = vmatprep.subr.mxu0 %v641
          %745 = vmatpush1.msra.mxu0 %v640
          %746 = vmatprep.subr.mxu0 %v645
          %747 = vmatpush1.msra.mxu0 %v644
          %748 = vmatprep.subr.mxu0 %v649
          %749 = vmatpush1.msra.mxu0 %v648
          %750 = vmatprep.subr.mxu0 %v653
          %751 = vmatpush1.msra.mxu0 %v652
          %752 = vmatprep.subr.mxu0 %v657
          %753 = vmatpush1.msra.mxu0 %v656
          %754 = vmatprep.subr.mxu0 %v661
          %755 = vmatpush1.msra.mxu0 %v660
          %756 = vmatprep.subr.mxu0 %v665
          %757 = vmatpush1.msra.mxu0 %v664
          %758 = vmatprep.subr.mxu0 %v669
          %759 = vmatpush1.msra.mxu0 %v668
          %760 = vmatprep.subr.mxu0 %v673
          %761 = vmatpush1.msra.mxu0 %v672
          %762 = vmatprep.mubr.f32.mxu0 %v541
          %763 = vmatmul.mubr.f32.gmra.mrb[0].mxu0 %v540
          %v764 = vpop.f32.mrb[0].mxu0
          %v765 = vadd.f32 %v681, %v764
          %v766 = vpop.f32.mrb[0].mxu0
          %v767 = vadd.f32 %v685, %v766
          %768 = vmatprep.mubr.f32.mxu0 %v543
          %769 = vmatmul.mubr.f32.gmra.mrb[0].mxu0 %v542
          %v770 = vpop.f32.mrb[0].mxu0
          %v771 = vadd.f32 %v681, %v770
          %v772 = vpop.f32.mrb[0].mxu0
          %v773 = vadd.f32 %v685, %v772
          %774 = vmatprep.mubr.f32.mxu0 %v545
          %775 = vmatmul.mubr.f32.gmra.mrb[0].mxu0 %v544
          %v776 = vpop.f32.mrb[0].mxu0
          %v777 = vadd.f32 %v681, %v776
          %v778 = vpop.f32.mrb[0].mxu0
          %v779 = vadd.f32 %v685, %v778
          %780 = vmatprep.mubr.f32.mxu0 %v547
          %781 = vmatmul.mubr.f32.gmra.mrb[0].mxu0 %v546
          %v782 = vpop.f32.mrb[0].mxu0
          %v783 = vadd.f32 %v681, %v782
          %v784 = vpop.f32.mrb[0].mxu0
          %v785 = vadd.f32 %v685, %v784
          %786 = vdwg.mxu0
          %787 = vmatprep.subr.mxu0 %v551
          %788 = vmatpush1.msra.mxu0 %v550
          %789 = vmatprep.subr.mxu0 %v555
          %790 = vmatpush1.msra.mxu0 %v554
          %791 = vmatprep.subr.mxu0 %v559
          %792 = vmatpush1.msra.mxu0 %v558
          %793 = vmatprep.subr.mxu0 %v563
          %794 = vmatpush1.msra.mxu0 %v562
          %795 = vmatprep.subr.mxu0 %v567
          %796 = vmatpush1.msra.mxu0 %v566
          %797 = vmatprep.subr.mxu0 %v571
          %798 = vmatpush1.msra.mxu0 %v570
          %799 = vmatprep.subr.mxu0 %v575
          %800 = vmatpush1.msra.mxu0 %v574
          %801 = vmatprep.subr.mxu0 %v579
          %802 = vmatpush1.msra.mxu0 %v578
          %803 = vmatprep.subr.mxu0 %v583
          %804 = vmatpush1.msra.mxu0 %v582
          %805 = vmatprep.subr.mxu0 %v587
          %806 = vmatpush1.msra.mxu0 %v586
          %807 = vmatprep.subr.mxu0 %v591
          %808 = vmatpush1.msra.mxu0 %v590
          %809 = vmatprep.subr.mxu0 %v595
          %810 = vmatpush1.msra.mxu0 %v594
          %811 = vmatprep.subr.mxu0 %v599
          %812 = vmatpush1.msra.mxu0 %v598
          %813 = vmatprep.subr.mxu0 %v603
          %814 = vmatpush1.msra.mxu0 %v602
          %815 = vmatprep.subr.mxu0 %v607
          %816 = vmatpush1.msra.mxu0 %v606
          %817 = vmatprep.subr.mxu0 %v611
          %818 = vmatpush1.msra.mxu0 %v610
          %819 = vmatprep.subr.mxu0 %v615
          %820 = vmatpush1.msra.mxu0 %v614
          %821 = vmatprep.subr.mxu0 %v619
          %822 = vmatpush1.msra.mxu0 %v618
          %823 = vmatprep.subr.mxu0 %v623
          %824 = vmatpush1.msra.mxu0 %v622
          %825 = vmatprep.subr.mxu0 %v627
          %826 = vmatpush1.msra.mxu0 %v626
          %827 = vmatprep.subr.mxu0 %v631
          %828 = vmatpush1.msra.mxu0 %v630
          %829 = vmatprep.subr.mxu0 %v635
          %830 = vmatpush1.msra.mxu0 %v634
          %831 = vmatprep.subr.mxu0 %v639
          %832 = vmatpush1.msra.mxu0 %v638
          %833 = vmatprep.subr.mxu0 %v643
          %834 = vmatpush1.msra.mxu0 %v642
          %835 = vmatprep.subr.mxu0 %v647
          %836 = vmatpush1.msra.mxu0 %v646
          %837 = vmatprep.subr.mxu0 %v651
          %838 = vmatpush1.msra.mxu0 %v650
          %839 = vmatprep.subr.mxu0 %v655
          %840 = vmatpush1.msra.mxu0 %v654
          %841 = vmatprep.subr.mxu0 %v659
          %842 = vmatpush1.msra.mxu0 %v658
          %843 = vmatprep.subr.mxu0 %v663
          %844 = vmatpush1.msra.mxu0 %v662
          %845 = vmatprep.subr.mxu0 %v667
          %846 = vmatpush1.msra.mxu0 %v666
          %847 = vmatprep.subr.mxu0 %v671
          %848 = vmatpush1.msra.mxu0 %v670
          %849 = vmatprep.subr.mxu0 %v675
          %850 = vmatpush1.msra.mxu0 %v674
          %851 = vmatprep.mubr.f32.mxu0 %v541
          %852 = vmatmul.mubr.f32.gmra.mrb[0].mxu0 %v540
          %v853 = vpop.f32.mrb[0].mxu0
          %v854 = vadd.f32 %v689, %v853
          %v855 = vpop.f32.mrb[0].mxu0
          %v856 = vadd.f32 %v693, %v855
          %857 = vmatprep.mubr.f32.mxu0 %v543
          %858 = vmatmul.mubr.f32.gmra.mrb[0].mxu0 %v542
          %v859 = vpop.f32.mrb[0].mxu0
          %v860 = vadd.f32 %v689, %v859
          %v861 = vpop.f32.mrb[0].mxu0
          %v862 = vadd.f32 %v693, %v861
          %863 = vmatprep.mubr.f32.mxu0 %v545
          %864 = vmatmul.mubr.f32.gmra.mrb[0].mxu0 %v544
          %v865 = vpop.f32.mrb[0].mxu0
          %v866 = vadd.f32 %v689, %v865
          %v867 = vpop.f32.mrb[0].mxu0
          %v868 = vadd.f32 %v693, %v867
          %869 = vmatprep.mubr.f32.mxu0 %v547
          %870 = vmatmul.mubr.f32.gmra.mrb[0].mxu0 %v546
          %v871 = vpop.f32.mrb[0].mxu0
          %v872 = vadd.f32 %v689, %v871
          %v873 = vpop.f32.mrb[0].mxu0
          %v874 = vadd.f32 %v693, %v873
          %875 = vdwg.mxu0
          %876 = vst [vmem:[#allocation2] sm:$0xff] %v765
          %877 = vst [vmem:[#allocation2 + $0x8] sm:$0xff] %v767
          %878 = vst [vmem:[#allocation2 + $0x10] sm:$0xff] %v854
          %879 = vst [vmem:[#allocation2 + $0x18] sm:$0xff] %v856
          %880 = vst [vmem:[#allocation2 + $0x20] sm:$0xff] %v771
          %881 = vst [vmem:[#allocation2 + $0x28] sm:$0xff] %v773
          %882 = vst [vmem:[#allocation2 + $0x30] sm:$0xff] %v860
          %883 = vst [vmem:[#allocation2 + $0x38] sm:$0xff] %v862
          %884 = vst [vmem:[#allocation2 + $0x40] sm:$0xff] %v777
          %885 = vst [vmem:[#allocation2 + $0x48] sm:$0xff] %v779
          %886 = vst [vmem:[#allocation2 + $0x50] sm:$0xff] %v866
          %887 = vst [vmem:[#allocation2 + $0x58] sm:$0xff] %v868
          %888 = vst [vmem:[#allocation2 + $0x60] sm:$0xff] %v783
          %889 = vst [vmem:[#allocation2 + $0x68] sm:$0xff] %v785
          %890 = vst [vmem:[#allocation2 + $0x70] sm:$0xff] %v872
          %891 = vst [vmem:[#allocation2 + $0x78] sm:$0xff] %v874
          %v892 = vld [vmem:[#allocation2 + $0x18] sm:$0xff]
          %v893 = vld [vmem:[#allocation2 + $0x38] sm:$0xff]
          %v894 = vld [vmem:[#allocation2 + $0x58] sm:$0xff]
          %v895 = vld [vmem:[#allocation2 + $0x78] sm:$0xff]
          %896 = vst [vmem:[#allocation3] sm:$0xff] %v892
          %897 = vst [vmem:[#allocation3 + $0x8] sm:$0xff] %v893
          %898 = vst [vmem:[#allocation3 + $0x10] sm:$0xff] %v894
          %899 = vst [vmem:[#allocation3 + $0x18] sm:$0xff] %v895
        $region72: #{tpu_custom_call.1} parent=55 // pred_fallthru
          _
        %v900 = vld [vmem:[%s525] sm:$0xff]
        %v901 = vld [vmem:[%s525 + $0x8] sm:$0xff]
        %v902 = vld [vmem:[%s525 + $0x10] sm:$0xff]
        %v903 = vld [vmem:[%s525 + $0x18] sm:$0xff]
        %v904 = vld [vmem:[%s525 + $0x20] sm:$0xff]
        %v905 = vld [vmem:[%s525 + $0x28] sm:$0xff]
        %v906 = vld [vmem:[%s525 + $0x30] sm:$0xff]
        %v907 = vld [vmem:[%s525 + $0x38] sm:$0xff]
        %v908 = vld [vmem:[%s525 + $0x40] sm:$0xff]
        %v909 = vld [vmem:[%s525 + $0x48] sm:$0xff]
        %v910 = vld [vmem:[%s525 + $0x50] sm:$0xff]
        %v911 = vld [vmem:[%s525 + $0x58] sm:$0xff]
        %v912 = vld [vmem:[%s525 + $0x60] sm:$0xff]
        %v913 = vld [vmem:[%s525 + $0x68] sm:$0xff]
        %v914 = vld [vmem:[%s525 + $0x70] sm:$0xff]
        %v915 = vld [vmem:[%s525 + $0x78] sm:$0xff]
        %v916 = vld [vmem:[%s525 + $0x80] sm:$0xff]
        %v917 = vld [vmem:[%s525 + $0x88] sm:$0xff]
        %v918 = vld [vmem:[%s525 + $0x90] sm:$0xff]
        %v919 = vld [vmem:[%s525 + $0x98] sm:$0xff]
        %v920 = vld [vmem:[%s525 + $0xa0] sm:$0xff]
        %v921 = vld [vmem:[%s525 + $0xa8] sm:$0xff]
        %v922 = vld [vmem:[%s525 + $0xb0] sm:$0xff]
        %v923 = vld [vmem:[%s525 + $0xb8] sm:$0xff]
        %v924 = vld [vmem:[%s525 + $0xc0] sm:$0xff]
        %v925 = vld [vmem:[%s525 + $0xc8] sm:$0xff]
        %v926 = vld [vmem:[%s525 + $0xd0] sm:$0xff]
        %v927 = vld [vmem:[%s525 + $0xd8] sm:$0xff]
        %v928 = vld [vmem:[%s525 + $0xe0] sm:$0xff]
        %v929 = vld [vmem:[%s525 + $0xe8] sm:$0xff]
        %v930 = vld [vmem:[%s525 + $0xf0] sm:$0xff]
        %v931 = vld [vmem:[%s525 + $0xf8] sm:$0xff]
        %v932 = vld [vmem:[%s525 + $0x100] sm:$0xff]
        %v933 = vld [vmem:[%s525 + $0x108] sm:$0xff]
        %v934 = vld [vmem:[%s525 + $0x110] sm:$0xff]
        %v935 = vld [vmem:[%s525 + $0x118] sm:$0xff]
        %v936 = vld [vmem:[%s525 + $0x120] sm:$0xff]
        %v937 = vld [vmem:[%s525 + $0x128] sm:$0xff]
        %v938 = vld [vmem:[%s525 + $0x130] sm:$0xff]
        %v939 = vld [vmem:[%s525 + $0x138] sm:$0xff]
        %v940 = vld [vmem:[%s525 + $0x140] sm:$0xff]
        %v941 = vld [vmem:[%s525 + $0x148] sm:$0xff]
        %v942 = vld [vmem:[%s525 + $0x150] sm:$0xff]
        %v943 = vld [vmem:[%s525 + $0x158] sm:$0xff]
        %v944 = vld [vmem:[%s525 + $0x160] sm:$0xff]
        %v945 = vld [vmem:[%s525 + $0x168] sm:$0xff]
        %v946 = vld [vmem:[%s525 + $0x170] sm:$0xff]
        %v947 = vld [vmem:[%s525 + $0x178] sm:$0xff]
        %v948 = vld [vmem:[%s525 + $0x180] sm:$0xff]
        %v949 = vld [vmem:[%s525 + $0x188] sm:$0xff]
        %v950 = vld [vmem:[%s525 + $0x190] sm:$0xff]
        %v951 = vld [vmem:[%s525 + $0x198] sm:$0xff]
        %v952 = vld [vmem:[%s525 + $0x1a0] sm:$0xff]
        %v953 = vld [vmem:[%s525 + $0x1a8] sm:$0xff]
        %v954 = vld [vmem:[%s525 + $0x1b0] sm:$0xff]
        %v955 = vld [vmem:[%s525 + $0x1b8] sm:$0xff]
        %v956 = vld [vmem:[%s525 + $0x1c0] sm:$0xff]
        %v957 = vld [vmem:[%s525 + $0x1c8] sm:$0xff]
        %v958 = vld [vmem:[%s525 + $0x1d0] sm:$0xff]
        %v959 = vld [vmem:[%s525 + $0x1d8] sm:$0xff]
        %v960 = vld [vmem:[%s525 + $0x1e0] sm:$0xff]
        %v961 = vld [vmem:[%s525 + $0x1e8] sm:$0xff]
        %v962 = vld [vmem:[%s525 + $0x1f0] sm:$0xff]
        %v963 = vld [vmem:[%s525 + $0x1f8] sm:$0xff]
        %v964 = vld [vmem:[%s436] sm:$0xff]
        %v965 = vld [vmem:[%s436 + $0x8] sm:$0xff]
        %v966 = vld [vmem:[%s436 + $0x10] sm:$0xff]
        %v967 = vld [vmem:[%s436 + $0x18] sm:$0xff]
        %v968 = vld [vmem:[%s436 + $0x20] sm:$0xff]
        %v969 = vld [vmem:[%s436 + $0x28] sm:$0xff]
        %v970 = vld [vmem:[%s436 + $0x30] sm:$0xff]
        %v971 = vld [vmem:[%s436 + $0x38] sm:$0xff]
        %v972 = vld [vmem:[%s436 + $0x40] sm:$0xff]
        %v973 = vld [vmem:[%s436 + $0x48] sm:$0xff]
        %v974 = vld [vmem:[%s436 + $0x50] sm:$0xff]
        %v975 = vld [vmem:[%s436 + $0x58] sm:$0xff]
        %v976 = vld [vmem:[%s436 + $0x60] sm:$0xff]
        %v977 = vld [vmem:[%s436 + $0x68] sm:$0xff]
        %v978 = vld [vmem:[%s436 + $0x70] sm:$0xff]
        %v979 = vld [vmem:[%s436 + $0x78] sm:$0xff]
        %v980 = vld [vmem:[%s436 + $0x80] sm:$0xff]
        %v981 = vld [vmem:[%s436 + $0x88] sm:$0xff]
        %v982 = vld [vmem:[%s436 + $0x90] sm:$0xff]
        %v983 = vld [vmem:[%s436 + $0x98] sm:$0xff]
        %v984 = vld [vmem:[%s436 + $0xa0] sm:$0xff]
        %v985 = vld [vmem:[%s436 + $0xa8] sm:$0xff]
        %v986 = vld [vmem:[%s436 + $0xb0] sm:$0xff]
        %v987 = vld [vmem:[%s436 + $0xb8] sm:$0xff]
        %v988 = vld [vmem:[%s436 + $0xc0] sm:$0xff]
        %v989 = vld [vmem:[%s436 + $0xc8] sm:$0xff]
        %v990 = vld [vmem:[%s436 + $0xd0] sm:$0xff]
        %v991 = vld [vmem:[%s436 + $0xd8] sm:$0xff]
        %v992 = vld [vmem:[%s436 + $0xe0] sm:$0xff]
        %v993 = vld [vmem:[%s436 + $0xe8] sm:$0xff]
        %v994 = vld [vmem:[%s436 + $0xf0] sm:$0xff]
        %v995 = vld [vmem:[%s436 + $0xf8] sm:$0xff]
        %v996 = vld [vmem:[%s535] sm:$0x1]
        %v998 = vlaneseq
        %v999 = vshrl.u32 %v998, 7
        %v1000 = vsub.s32 0, %v999
        %v1001 = vrot.slane %v996, %v1000
        %1003 = vmatprep.subr.mxu0 0.0
        %1004 = vmatpush1.msra.mxu0 %v964
        %1005 = vmatprep.subr.mxu0 0.0
        %1006 = vmatpush1.msra.mxu0 %v965
        %1007 = vmatprep.subr.mxu0 0.0
        %1008 = vmatpush1.msra.mxu0 %v966
        %1009 = vmatprep.subr.mxu0 0.0
        %1010 = vmatpush1.msra.mxu0 %v967
        %1011 = vmatprep.subr.mxu0 0.0
        %1012 = vmatpush1.msra.mxu0 %v968
        %1013 = vmatprep.subr.mxu0 0.0
        %1014 = vmatpush1.msra.mxu0 %v969
        %1015 = vmatprep.subr.mxu0 0.0
        %1016 = vmatpush1.msra.mxu0 %v970
        %1017 = vmatprep.subr.mxu0 0.0
        %1018 = vmatpush1.msra.mxu0 %v971
        %1019 = vmatprep.subr.mxu0 0.0
        %1020 = vmatpush1.msra.mxu0 %v972
        %1021 = vmatprep.subr.mxu0 0.0
        %1022 = vmatpush1.msra.mxu0 %v973
        %1023 = vmatprep.subr.mxu0 0.0
        %1024 = vmatpush1.msra.mxu0 %v974
        %1025 = vmatprep.subr.mxu0 0.0
        %1026 = vmatpush1.msra.mxu0 %v975
        %1027 = vmatprep.subr.mxu0 0.0
        %1028 = vmatpush1.msra.mxu0 %v976
        %1029 = vmatprep.subr.mxu0 0.0
        %1030 = vmatpush1.msra.mxu0 %v977
        %1031 = vmatprep.subr.mxu0 0.0
        %1032 = vmatpush1.msra.mxu0 %v978
        %1033 = vmatprep.subr.mxu0 0.0
        %1034 = vmatpush1.msra.mxu0 %v979
        %1035 = vmatprep.subr.mxu0 0.0
        %1036 = vmatpush1.msra.mxu0 %v980
        %1037 = vmatprep.subr.mxu0 0.0
        %1038 = vmatpush1.msra.mxu0 %v981
        %1039 = vmatprep.subr.mxu0 0.0
        %1040 = vmatpush1.msra.mxu0 %v982
        %1041 = vmatprep.subr.mxu0 0.0
        %1042 = vmatpush1.msra.mxu0 %v983
        %1043 = vmatprep.subr.mxu0 0.0
        %1044 = vmatpush1.msra.mxu0 %v984
        %1045 = vmatprep.subr.mxu0 0.0
        %1046 = vmatpush1.msra.mxu0 %v985
        %1047 = vmatprep.subr.mxu0 0.0
        %1048 = vmatpush1.msra.mxu0 %v986
        %1049 = vmatprep.subr.mxu0 0.0
        %1050 = vmatpush1.msra.mxu0 %v987
        %1051 = vmatprep.subr.mxu0 0.0
        %1052 = vmatpush1.msra.mxu0 %v988
        %1053 = vmatprep.subr.mxu0 0.0
        %1054 = vmatpush1.msra.mxu0 %v989
        %1055 = vmatprep.subr.mxu0 0.0
        %1056 = vmatpush1.msra.mxu0 %v990
        %1057 = vmatprep.subr.mxu0 0.0
        %1058 = vmatpush1.msra.mxu0 %v991
        %1059 = vmatprep.subr.mxu0 0.0
        %1060 = vmatpush1.msra.mxu0 %v992
        %1061 = vmatprep.subr.mxu0 0.0
        %1062 = vmatpush1.msra.mxu0 %v993
        %1063 = vmatprep.subr.mxu0 0.0
        %1064 = vmatpush1.msra.mxu0 %v994
        %1065 = vmatprep.subr.mxu0 0.0
        %1066 = vmatpush1.msra.mxu0 %v995
        %1067 = vmatprep.mubr.f32.mxu0 %v901
        %1068 = vmatmul.mubr.f32.gmra.mrb[0].mxu0 %v900
        %v1069 = vpop.f32.mrb[0].mxu0
        %v1070 = vadd.f32 %v1001, %v1069
        %v1071 = vpop.f32.mrb[0].mxu0
        %1072 = vmatprep.mubr.f32.mxu0 %v903
        %1073 = vmatmul.mubr.f32.gmra.mrb[0].mxu0 %v902
        %v1074 = vpop.f32.mrb[0].mxu0
        %v1075 = vadd.f32 %v1001, %v1074
        %v1076 = vpop.f32.mrb[0].mxu0
        %1077 = vmatprep.mubr.f32.mxu0 %v905
        %1078 = vmatmul.mubr.f32.gmra.mrb[0].mxu0 %v904
        %v1079 = vpop.f32.mrb[0].mxu0
        %v1080 = vadd.f32 %v1001, %v1079
        %v1081 = vpop.f32.mrb[0].mxu0
        %1082 = vmatprep.mubr.f32.mxu0 %v907
        %1083 = vmatmul.mubr.f32.gmra.mrb[0].mxu0 %v906
        %v1084 = vpop.f32.mrb[0].mxu0
        %v1085 = vadd.f32 %v1001, %v1084
        %v1086 = vpop.f32.mrb[0].mxu0
        %1087 = vmatprep.mubr.f32.mxu0 %v909
        %1088 = vmatmul.mubr.f32.gmra.mrb[0].mxu0 %v908
        %v1089 = vpop.f32.mrb[0].mxu0
        %v1090 = vadd.f32 %v1001, %v1089
        %v1091 = vpop.f32.mrb[0].mxu0
        %1092 = vmatprep.mubr.f32.mxu0 %v911
        %1093 = vmatmul.mubr.f32.gmra.mrb[0].mxu0 %v910
        %v1094 = vpop.f32.mrb[0].mxu0
        %v1095 = vadd.f32 %v1001, %v1094
        %v1096 = vpop.f32.mrb[0].mxu0
        %1097 = vmatprep.mubr.f32.mxu0 %v913
        %1098 = vmatmul.mubr.f32.gmra.mrb[0].mxu0 %v912
        %v1099 = vpop.f32.mrb[0].mxu0
        %v1100 = vadd.f32 %v1001, %v1099
        %v1101 = vpop.f32.mrb[0].mxu0
        %1102 = vmatprep.mubr.f32.mxu0 %v915
        %1103 = vmatmul.mubr.f32.gmra.mrb[0].mxu0 %v914
        %v1104 = vpop.f32.mrb[0].mxu0
        %v1105 = vadd.f32 %v1001, %v1104
        %v1106 = vpop.f32.mrb[0].mxu0
        %1107 = vmatprep.mubr.f32.mxu0 %v917
        %1108 = vmatmul.mubr.f32.gmra.mrb[0].mxu0 %v916
        %v1109 = vpop.f32.mrb[0].mxu0
        %v1110 = vadd.f32 %v1001, %v1109
        %v1111 = vpop.f32.mrb[0].mxu0
        %1112 = vmatprep.mubr.f32.mxu0 %v919
        %1113 = vmatmul.mubr.f32.gmra.mrb[0].mxu0 %v918
        %v1114 = vpop.f32.mrb[0].mxu0
        %v1115 = vadd.f32 %v1001, %v1114
        %v1116 = vpop.f32.mrb[0].mxu0
        %1117 = vmatprep.mubr.f32.mxu0 %v921
        %1118 = vmatmul.mubr.f32.gmra.mrb[0].mxu0 %v920
        %v1119 = vpop.f32.mrb[0].mxu0
        %v1120 = vadd.f32 %v1001, %v1119
        %v1121 = vpop.f32.mrb[0].mxu0
        %1122 = vmatprep.mubr.f32.mxu0 %v923
        %1123 = vmatmul.mubr.f32.gmra.mrb[0].mxu0 %v922
        %v1124 = vpop.f32.mrb[0].mxu0
        %v1125 = vadd.f32 %v1001, %v1124
        %v1126 = vpop.f32.mrb[0].mxu0
        %1127 = vmatprep.mubr.f32.mxu0 %v925
        %1128 = vmatmul.mubr.f32.gmra.mrb[0].mxu0 %v924
        %v1129 = vpop.f32.mrb[0].mxu0
        %v1130 = vadd.f32 %v1001, %v1129
        %v1131 = vpop.f32.mrb[0].mxu0
        %1132 = vmatprep.mubr.f32.mxu0 %v927
        %1133 = vmatmul.mubr.f32.gmra.mrb[0].mxu0 %v926
        %v1134 = vpop.f32.mrb[0].mxu0
        %v1135 = vadd.f32 %v1001, %v1134
        %v1136 = vpop.f32.mrb[0].mxu0
        %1137 = vmatprep.mubr.f32.mxu0 %v929
        %1138 = vmatmul.mubr.f32.gmra.mrb[0].mxu0 %v928
        %v1139 = vpop.f32.mrb[0].mxu0
        %v1140 = vadd.f32 %v1001, %v1139
        %v1141 = vpop.f32.mrb[0].mxu0
        %1142 = vmatprep.mubr.f32.mxu0 %v931
        %1143 = vmatmul.mubr.f32.gmra.mrb[0].mxu0 %v930
        %v1144 = vpop.f32.mrb[0].mxu0
        %v1145 = vadd.f32 %v1001, %v1144
        %v1146 = vpop.f32.mrb[0].mxu0
        %1147 = vmatprep.mubr.f32.mxu0 %v933
        %1148 = vmatmul.mubr.f32.gmra.mrb[0].mxu0 %v932
        %v1149 = vpop.f32.mrb[0].mxu0
        %v1150 = vadd.f32 %v1001, %v1149
        %v1151 = vpop.f32.mrb[0].mxu0
        %1152 = vmatprep.mubr.f32.mxu0 %v935
        %1153 = vmatmul.mubr.f32.gmra.mrb[0].mxu0 %v934
        %v1154 = vpop.f32.mrb[0].mxu0
        %v1155 = vadd.f32 %v1001, %v1154
        %v1156 = vpop.f32.mrb[0].mxu0
        %1157 = vmatprep.mubr.f32.mxu0 %v937
        %1158 = vmatmul.mubr.f32.gmra.mrb[0].mxu0 %v936
        %v1159 = vpop.f32.mrb[0].mxu0
        %v1160 = vadd.f32 %v1001, %v1159
        %v1161 = vpop.f32.mrb[0].mxu0
        %1162 = vmatprep.mubr.f32.mxu0 %v939
        %1163 = vmatmul.mubr.f32.gmra.mrb[0].mxu0 %v938
        %v1164 = vpop.f32.mrb[0].mxu0
        %v1165 = vadd.f32 %v1001, %v1164
        %v1166 = vpop.f32.mrb[0].mxu0
        %1167 = vmatprep.mubr.f32.mxu0 %v941
        %1168 = vmatmul.mubr.f32.gmra.mrb[0].mxu0 %v940
        %v1169 = vpop.f32.mrb[0].mxu0
        %v1170 = vadd.f32 %v1001, %v1169
        %v1171 = vpop.f32.mrb[0].mxu0
        %1172 = vmatprep.mubr.f32.mxu0 %v943
        %1173 = vmatmul.mubr.f32.gmra.mrb[0].mxu0 %v942
        %v1174 = vpop.f32.mrb[0].mxu0
        %v1175 = vadd.f32 %v1001, %v1174
        %v1176 = vpop.f32.mrb[0].mxu0
        %1177 = vmatprep.mubr.f32.mxu0 %v945
        %1178 = vmatmul.mubr.f32.gmra.mrb[0].mxu0 %v944
        %v1179 = vpop.f32.mrb[0].mxu0
        %v1180 = vadd.f32 %v1001, %v1179
        %v1181 = vpop.f32.mrb[0].mxu0
        %1182 = vmatprep.mubr.f32.mxu0 %v947
        %1183 = vmatmul.mubr.f32.gmra.mrb[0].mxu0 %v946
        %v1184 = vpop.f32.mrb[0].mxu0
        %v1185 = vadd.f32 %v1001, %v1184
        %v1186 = vpop.f32.mrb[0].mxu0
        %1187 = vmatprep.mubr.f32.mxu0 %v949
        %1188 = vmatmul.mubr.f32.gmra.mrb[0].mxu0 %v948
        %v1189 = vpop.f32.mrb[0].mxu0
        %v1190 = vadd.f32 %v1001, %v1189
        %v1191 = vpop.f32.mrb[0].mxu0
        %1192 = vmatprep.mubr.f32.mxu0 %v951
        %1193 = vmatmul.mubr.f32.gmra.mrb[0].mxu0 %v950
        %v1194 = vpop.f32.mrb[0].mxu0
        %v1195 = vadd.f32 %v1001, %v1194
        %v1196 = vpop.f32.mrb[0].mxu0
        %1197 = vmatprep.mubr.f32.mxu0 %v953
        %1198 = vmatmul.mubr.f32.gmra.mrb[0].mxu0 %v952
        %v1199 = vpop.f32.mrb[0].mxu0
        %v1200 = vadd.f32 %v1001, %v1199
        %v1201 = vpop.f32.mrb[0].mxu0
        %1202 = vmatprep.mubr.f32.mxu0 %v955
        %1203 = vmatmul.mubr.f32.gmra.mrb[0].mxu0 %v954
        %v1204 = vpop.f32.mrb[0].mxu0
        %v1205 = vadd.f32 %v1001, %v1204
        %v1206 = vpop.f32.mrb[0].mxu0
        %1207 = vmatprep.mubr.f32.mxu0 %v957
        %1208 = vmatmul.mubr.f32.gmra.mrb[0].mxu0 %v956
        %v1209 = vpop.f32.mrb[0].mxu0
        %v1210 = vadd.f32 %v1001, %v1209
        %v1211 = vpop.f32.mrb[0].mxu0
        %1212 = vmatprep.mubr.f32.mxu0 %v959
        %1213 = vmatmul.mubr.f32.gmra.mrb[0].mxu0 %v958
        %v1214 = vpop.f32.mrb[0].mxu0
        %v1215 = vadd.f32 %v1001, %v1214
        %v1216 = vpop.f32.mrb[0].mxu0
        %1217 = vmatprep.mubr.f32.mxu0 %v961
        %1218 = vmatmul.mubr.f32.gmra.mrb[0].mxu0 %v960
        %v1219 = vpop.f32.mrb[0].mxu0
        %v1220 = vadd.f32 %v1001, %v1219
        %v1221 = vpop.f32.mrb[0].mxu0
        %1222 = vmatprep.mubr.f32.mxu0 %v963
        %1223 = vmatmul.mubr.f32.gmra.mrb[0].mxu0 %v962
        %v1224 = vpop.f32.mrb[0].mxu0
        %v1225 = vadd.f32 %v1001, %v1224
        %v1226 = vpop.f32.mrb[0].mxu0
        %1227 = vdwg.mxu0
        %v1228 = vld [vmem:[%s507] sm:$0xff]
        %v1229 = vld [vmem:[%s507 + $0x8] sm:$0xff]
        %v1230 = vld [vmem:[%s507 + $0x10] sm:$0xff]
        %v1231 = vld [vmem:[%s507 + $0x18] sm:$0xff]
        %v1232 = vld [vmem:[%s507 + $0x20] sm:$0xff]
        %v1233 = vld [vmem:[%s507 + $0x28] sm:$0xff]
        %v1234 = vld [vmem:[%s507 + $0x30] sm:$0xff]
        %v1235 = vld [vmem:[%s507 + $0x38] sm:$0xff]
        %v1236 = vld [vmem:[%s507 + $0x40] sm:$0xff]
        %v1237 = vld [vmem:[%s507 + $0x48] sm:$0xff]
        %v1238 = vld [vmem:[%s507 + $0x50] sm:$0xff]
        %v1239 = vld [vmem:[%s507 + $0x58] sm:$0xff]
        %v1240 = vld [vmem:[%s507 + $0x60] sm:$0xff]
        %v1241 = vld [vmem:[%s507 + $0x68] sm:$0xff]
        %v1242 = vld [vmem:[%s507 + $0x70] sm:$0xff]
        %v1243 = vld [vmem:[%s507 + $0x78] sm:$0xff]
        %v1244 = vld [vmem:[%s507 + $0x80] sm:$0xff]
        %v1245 = vld [vmem:[%s507 + $0x88] sm:$0xff]
        %v1246 = vld [vmem:[%s507 + $0x90] sm:$0xff]
        %v1247 = vld [vmem:[%s507 + $0x98] sm:$0xff]
        %v1248 = vld [vmem:[%s507 + $0xa0] sm:$0xff]
        %v1249 = vld [vmem:[%s507 + $0xa8] sm:$0xff]
        %v1250 = vld [vmem:[%s507 + $0xb0] sm:$0xff]
        %v1251 = vld [vmem:[%s507 + $0xb8] sm:$0xff]
        %v1252 = vld [vmem:[%s507 + $0xc0] sm:$0xff]
        %v1253 = vld [vmem:[%s507 + $0xc8] sm:$0xff]
        %v1254 = vld [vmem:[%s507 + $0xd0] sm:$0xff]
        %v1255 = vld [vmem:[%s507 + $0xd8] sm:$0xff]
        %v1256 = vld [vmem:[%s507 + $0xe0] sm:$0xff]
        %v1257 = vld [vmem:[%s507 + $0xe8] sm:$0xff]
        %v1258 = vld [vmem:[%s507 + $0xf0] sm:$0xff]
        %v1259 = vld [vmem:[%s507 + $0xf8] sm:$0xff]
        %v1260 = vld [vmem:[%s513] sm:$0xff]
        %v1261 = vld [vmem:[%s513 + $0x8] sm:$0xff]
        %v1262 = vld [vmem:[%s513 + $0x10] sm:$0xff]
        %v1263 = vld [vmem:[%s513 + $0x18] sm:$0xff]
        %v1264 = vld [vmem:[%s513 + $0x20] sm:$0xff]
        %v1265 = vld [vmem:[%s513 + $0x28] sm:$0xff]
        %v1266 = vld [vmem:[%s513 + $0x30] sm:$0xff]
        %v1267 = vld [vmem:[%s513 + $0x38] sm:$0xff]
        %v1268 = vld [vmem:[%s513 + $0x40] sm:$0xff]
        %v1269 = vld [vmem:[%s513 + $0x48] sm:$0xff]
        %v1270 = vld [vmem:[%s513 + $0x50] sm:$0xff]
        %v1271 = vld [vmem:[%s513 + $0x58] sm:$0xff]
        %v1272 = vld [vmem:[%s513 + $0x60] sm:$0xff]
        %v1273 = vld [vmem:[%s513 + $0x68] sm:$0xff]
        %v1274 = vld [vmem:[%s513 + $0x70] sm:$0xff]
        %v1275 = vld [vmem:[%s513 + $0x78] sm:$0xff]
        %v1276 = vld [vmem:[%s513 + $0x80] sm:$0xff]
        %v1277 = vld [vmem:[%s513 + $0x88] sm:$0xff]
        %v1278 = vld [vmem:[%s513 + $0x90] sm:$0xff]
        %v1279 = vld [vmem:[%s513 + $0x98] sm:$0xff]
        %v1280 = vld [vmem:[%s513 + $0xa0] sm:$0xff]
        %v1281 = vld [vmem:[%s513 + $0xa8] sm:$0xff]
        %v1282 = vld [vmem:[%s513 + $0xb0] sm:$0xff]
        %v1283 = vld [vmem:[%s513 + $0xb8] sm:$0xff]
        %v1284 = vld [vmem:[%s513 + $0xc0] sm:$0xff]
        %v1285 = vld [vmem:[%s513 + $0xc8] sm:$0xff]
        %v1286 = vld [vmem:[%s513 + $0xd0] sm:$0xff]
        %v1287 = vld [vmem:[%s513 + $0xd8] sm:$0xff]
        %v1288 = vld [vmem:[%s513 + $0xe0] sm:$0xff]
        %v1289 = vld [vmem:[%s513 + $0xe8] sm:$0xff]
        %v1290 = vld [vmem:[%s513 + $0xf0] sm:$0xff]
        %v1291 = vld [vmem:[%s513 + $0xf8] sm:$0xff]
        %v1292 = vlaneseq
        %v1293 = vand.u32 %v1292, 127
        %1294 = vset.pattern.permute.xlu0 0
        %1295 = vperm.xlu0 %1294, %v1228
        %v1296 = vpop.permute.xlu0 %1295
        %1297 = vset.pattern.permute.xlu0 0
        %1298 = vperm.xlu0 %1297, %v1229
        %v1299 = vpop.permute.xlu0 %1298
        %1300 = vset.pattern.permute.xlu0 0
        %1301 = vperm.xlu0 %1300, %v1230
        %v1302 = vpop.permute.xlu0 %1301
        %1303 = vset.pattern.permute.xlu0 0
        %1304 = vperm.xlu0 %1303, %v1231
        %v1305 = vpop.permute.xlu0 %1304
        %1306 = vset.pattern.permute.xlu0 0
        %1307 = vperm.xlu0 %1306, %v1232
        %v1308 = vpop.permute.xlu0 %1307
        %1309 = vset.pattern.permute.xlu0 0
        %1310 = vperm.xlu0 %1309, %v1233
        %v1311 = vpop.permute.xlu0 %1310
        %1312 = vset.pattern.permute.xlu0 0
        %1313 = vperm.xlu0 %1312, %v1234
        %v1314 = vpop.permute.xlu0 %1313
        %1315 = vset.pattern.permute.xlu0 0
        %1316 = vperm.xlu0 %1315, %v1235
        %v1317 = vpop.permute.xlu0 %1316
        %1318 = vset.pattern.permute.xlu0 0
        %1319 = vperm.xlu0 %1318, %v1236
        %v1320 = vpop.permute.xlu0 %1319
        %1321 = vset.pattern.permute.xlu0 0
        %1322 = vperm.xlu0 %1321, %v1237
        %v1323 = vpop.permute.xlu0 %1322
        %1324 = vset.pattern.permute.xlu0 0
        %1325 = vperm.xlu0 %1324, %v1238
        %v1326 = vpop.permute.xlu0 %1325
        %1327 = vset.pattern.permute.xlu0 0
        %1328 = vperm.xlu0 %1327, %v1239
        %v1329 = vpop.permute.xlu0 %1328
        %1330 = vset.pattern.permute.xlu0 0
        %1331 = vperm.xlu0 %1330, %v1240
        %v1332 = vpop.permute.xlu0 %1331
        %1333 = vset.pattern.permute.xlu0 0
        %1334 = vperm.xlu0 %1333, %v1241
        %v1335 = vpop.permute.xlu0 %1334
        %1336 = vset.pattern.permute.xlu0 0
        %1337 = vperm.xlu0 %1336, %v1242
        %v1338 = vpop.permute.xlu0 %1337
        %1339 = vset.pattern.permute.xlu0 0
        %1340 = vperm.xlu0 %1339, %v1243
        %v1341 = vpop.permute.xlu0 %1340
        %1342 = vset.pattern.permute.xlu0 0
        %1343 = vperm.xlu0 %1342, %v1244
        %v1344 = vpop.permute.xlu0 %1343
        %1345 = vset.pattern.permute.xlu0 0
        %1346 = vperm.xlu0 %1345, %v1245
        %v1347 = vpop.permute.xlu0 %1346
        %1348 = vset.pattern.permute.xlu0 0
        %1349 = vperm.xlu0 %1348, %v1246
        %v1350 = vpop.permute.xlu0 %1349
        %1351 = vset.pattern.permute.xlu0 0
        %1352 = vperm.xlu0 %1351, %v1247
        %v1353 = vpop.permute.xlu0 %1352
        %1354 = vset.pattern.permute.xlu0 0
        %1355 = vperm.xlu0 %1354, %v1248
        %v1356 = vpop.permute.xlu0 %1355
        %1357 = vset.pattern.permute.xlu0 0
        %1358 = vperm.xlu0 %1357, %v1249
        %v1359 = vpop.permute.xlu0 %1358
        %1360 = vset.pattern.permute.xlu0 0
        %1361 = vperm.xlu0 %1360, %v1250
        %v1362 = vpop.permute.xlu0 %1361
        %1363 = vset.pattern.permute.xlu0 0
        %1364 = vperm.xlu0 %1363, %v1251
        %v1365 = vpop.permute.xlu0 %1364
        %1366 = vset.pattern.permute.xlu0 0
        %1367 = vperm.xlu0 %1366, %v1252
        %v1368 = vpop.permute.xlu0 %1367
        %1369 = vset.pattern.permute.xlu0 0
        %1370 = vperm.xlu0 %1369, %v1253
        %v1371 = vpop.permute.xlu0 %1370
        %1372 = vset.pattern.permute.xlu0 0
        %1373 = vperm.xlu0 %1372, %v1254
        %v1374 = vpop.permute.xlu0 %1373
        %1375 = vset.pattern.permute.xlu0 0
        %1376 = vperm.xlu0 %1375, %v1255
        %v1377 = vpop.permute.xlu0 %1376
        %1378 = vset.pattern.permute.xlu0 0
        %1379 = vperm.xlu0 %1378, %v1256
        %v1380 = vpop.permute.xlu0 %1379
        %1381 = vset.pattern.permute.xlu0 0
        %1382 = vperm.xlu0 %1381, %v1257
        %v1383 = vpop.permute.xlu0 %1382
        %1384 = vset.pattern.permute.xlu0 0
        %1385 = vperm.xlu0 %1384, %v1258
        %v1386 = vpop.permute.xlu0 %1385
        %1387 = vset.pattern.permute.xlu0 0
        %1388 = vperm.xlu0 %1387, %v1259
        %v1389 = vpop.permute.xlu0 %1388
        %vm1390 = vcmp.eq.s32.totalorder %v1293, %v1296
        %vm1391 = vcmp.eq.s32.totalorder %v1293, %v1299
        %vm1392 = vcmp.eq.s32.totalorder %v1293, %v1302
        %vm1393 = vcmp.eq.s32.totalorder %v1293, %v1305
        %vm1394 = vcmp.eq.s32.totalorder %v1293, %v1308
        %vm1395 = vcmp.eq.s32.totalorder %v1293, %v1311
        %vm1396 = vcmp.eq.s32.totalorder %v1293, %v1314
        %vm1397 = vcmp.eq.s32.totalorder %v1293, %v1317
        %vm1398 = vcmp.eq.s32.totalorder %v1293, %v1320
        %vm1399 = vcmp.eq.s32.totalorder %v1293, %v1323
        %vm1400 = vcmp.eq.s32.totalorder %v1293, %v1326
        %vm1401 = vcmp.eq.s32.totalorder %v1293, %v1329
        %vm1402 = vcmp.eq.s32.totalorder %v1293, %v1332
        %vm1403 = vcmp.eq.s32.totalorder %v1293, %v1335
        %vm1404 = vcmp.eq.s32.totalorder %v1293, %v1338
        %vm1405 = vcmp.eq.s32.totalorder %v1293, %v1341
        %vm1406 = vcmp.eq.s32.totalorder %v1293, %v1344
        %vm1407 = vcmp.eq.s32.totalorder %v1293, %v1347
        %vm1408 = vcmp.eq.s32.totalorder %v1293, %v1350
        %vm1409 = vcmp.eq.s32.totalorder %v1293, %v1353
        %vm1410 = vcmp.eq.s32.totalorder %v1293, %v1356
        %vm1411 = vcmp.eq.s32.totalorder %v1293, %v1359
        %vm1412 = vcmp.eq.s32.totalorder %v1293, %v1362
        %vm1413 = vcmp.eq.s32.totalorder %v1293, %v1365
        %vm1414 = vcmp.eq.s32.totalorder %v1293, %v1368
        %vm1415 = vcmp.eq.s32.totalorder %v1293, %v1371
        %vm1416 = vcmp.eq.s32.totalorder %v1293, %v1374
        %vm1417 = vcmp.eq.s32.totalorder %v1293, %v1377
        %vm1418 = vcmp.eq.s32.totalorder %v1293, %v1380
        %vm1419 = vcmp.eq.s32.totalorder %v1293, %v1383
        %vm1420 = vcmp.eq.s32.totalorder %v1293, %v1386
        %vm1421 = vcmp.eq.s32.totalorder %v1293, %v1389
        %v1422 = vsel %vm1390, 1, 0
        %v1423 = vsel %vm1391, 1, 0
        %v1424 = vsel %vm1392, 1, 0
        %v1425 = vsel %vm1393, 1, 0
        %v1426 = vsel %vm1394, 1, 0
        %v1427 = vsel %vm1395, 1, 0
        %v1428 = vsel %vm1396, 1, 0
        %v1429 = vsel %vm1397, 1, 0
        %v1430 = vsel %vm1398, 1, 0
        %v1431 = vsel %vm1399, 1, 0
        %v1432 = vsel %vm1400, 1, 0
        %v1433 = vsel %vm1401, 1, 0
        %v1434 = vsel %vm1402, 1, 0
        %v1435 = vsel %vm1403, 1, 0
        %v1436 = vsel %vm1404, 1, 0
        %v1437 = vsel %vm1405, 1, 0
        %v1438 = vsel %vm1406, 1, 0
        %v1439 = vsel %vm1407, 1, 0
        %v1440 = vsel %vm1408, 1, 0
        %v1441 = vsel %vm1409, 1, 0
        %v1442 = vsel %vm1410, 1, 0
        %v1443 = vsel %vm1411, 1, 0
        %v1444 = vsel %vm1412, 1, 0
        %v1445 = vsel %vm1413, 1, 0
        %v1446 = vsel %vm1414, 1, 0
        %v1447 = vsel %vm1415, 1, 0
        %v1448 = vsel %vm1416, 1, 0
        %v1449 = vsel %vm1417, 1, 0
        %v1450 = vsel %vm1418, 1, 0
        %v1451 = vsel %vm1419, 1, 0
        %v1452 = vsel %vm1420, 1, 0
        %v1453 = vsel %vm1421, 1, 0
        %v1454 = vcvt.s32.f32 %v1422
        %v1455 = vcvt.s32.f32 %v1423
        %v1456 = vcvt.s32.f32 %v1424
        %v1457 = vcvt.s32.f32 %v1425
        %v1458 = vcvt.s32.f32 %v1426
        %v1459 = vcvt.s32.f32 %v1427
        %v1460 = vcvt.s32.f32 %v1428
        %v1461 = vcvt.s32.f32 %v1429
        %v1462 = vcvt.s32.f32 %v1430
        %v1463 = vcvt.s32.f32 %v1431
        %v1464 = vcvt.s32.f32 %v1432
        %v1465 = vcvt.s32.f32 %v1433
        %v1466 = vcvt.s32.f32 %v1434
        %v1467 = vcvt.s32.f32 %v1435
        %v1468 = vcvt.s32.f32 %v1436
        %v1469 = vcvt.s32.f32 %v1437
        %v1470 = vcvt.s32.f32 %v1438
        %v1471 = vcvt.s32.f32 %v1439
        %v1472 = vcvt.s32.f32 %v1440
        %v1473 = vcvt.s32.f32 %v1441
        %v1474 = vcvt.s32.f32 %v1442
        %v1475 = vcvt.s32.f32 %v1443
        %v1476 = vcvt.s32.f32 %v1444
        %v1477 = vcvt.s32.f32 %v1445
        %v1478 = vcvt.s32.f32 %v1446
        %v1479 = vcvt.s32.f32 %v1447
        %v1480 = vcvt.s32.f32 %v1448
        %v1481 = vcvt.s32.f32 %v1449
        %v1482 = vcvt.s32.f32 %v1450
        %v1483 = vcvt.s32.f32 %v1451
        %v1484 = vcvt.s32.f32 %v1452
        %v1485 = vcvt.s32.f32 %v1453
        %1486 = vset.pattern.permute.xlu0 0
        %1487 = vperm.xlu0 %1486, %v1260
        %v1488 = vpop.permute.xlu0 %1487
        %1489 = vset.pattern.permute.xlu0 0
        %1490 = vperm.xlu0 %1489, %v1261
        %v1491 = vpop.permute.xlu0 %1490
        %1492 = vset.pattern.permute.xlu0 0
        %1493 = vperm.xlu0 %1492, %v1262
        %v1494 = vpop.permute.xlu0 %1493
        %1495 = vset.pattern.permute.xlu0 0
        %1496 = vperm.xlu0 %1495, %v1263
        %v1497 = vpop.permute.xlu0 %1496
        %1498 = vset.pattern.permute.xlu0 0
        %1499 = vperm.xlu0 %1498, %v1264
        %v1500 = vpop.permute.xlu0 %1499
        %1501 = vset.pattern.permute.xlu0 0
        %1502 = vperm.xlu0 %1501, %v1265
        %v1503 = vpop.permute.xlu0 %1502
        %1504 = vset.pattern.permute.xlu0 0
        %1505 = vperm.xlu0 %1504, %v1266
        %v1506 = vpop.permute.xlu0 %1505
        %1507 = vset.pattern.permute.xlu0 0
        %1508 = vperm.xlu0 %1507, %v1267
        %v1509 = vpop.permute.xlu0 %1508
        %1510 = vset.pattern.permute.xlu0 0
        %1511 = vperm.xlu0 %1510, %v1268
        %v1512 = vpop.permute.xlu0 %1511
        %1513 = vset.pattern.permute.xlu0 0
        %1514 = vperm.xlu0 %1513, %v1269
        %v1515 = vpop.permute.xlu0 %1514
        %1516 = vset.pattern.permute.xlu0 0
        %1517 = vperm.xlu0 %1516, %v1270
        %v1518 = vpop.permute.xlu0 %1517
        %1519 = vset.pattern.permute.xlu0 0
        %1520 = vperm.xlu0 %1519, %v1271
        %v1521 = vpop.permute.xlu0 %1520
        %1522 = vset.pattern.permute.xlu0 0
        %1523 = vperm.xlu0 %1522, %v1272
        %v1524 = vpop.permute.xlu0 %1523
        %1525 = vset.pattern.permute.xlu0 0
        %1526 = vperm.xlu0 %1525, %v1273
        %v1527 = vpop.permute.xlu0 %1526
        %1528 = vset.pattern.permute.xlu0 0
        %1529 = vperm.xlu0 %1528, %v1274
        %v1530 = vpop.permute.xlu0 %1529
        %1531 = vset.pattern.permute.xlu0 0
        %1532 = vperm.xlu0 %1531, %v1275
        %v1533 = vpop.permute.xlu0 %1532
        %1534 = vset.pattern.permute.xlu0 0
        %1535 = vperm.xlu0 %1534, %v1276
        %v1536 = vpop.permute.xlu0 %1535
        %1537 = vset.pattern.permute.xlu0 0
        %1538 = vperm.xlu0 %1537, %v1277
        %v1539 = vpop.permute.xlu0 %1538
        %1540 = vset.pattern.permute.xlu0 0
        %1541 = vperm.xlu0 %1540, %v1278
        %v1542 = vpop.permute.xlu0 %1541
        %1543 = vset.pattern.permute.xlu0 0
        %1544 = vperm.xlu0 %1543, %v1279
        %v1545 = vpop.permute.xlu0 %1544
        %1546 = vset.pattern.permute.xlu0 0
        %1547 = vperm.xlu0 %1546, %v1280
        %v1548 = vpop.permute.xlu0 %1547
        %1549 = vset.pattern.permute.xlu0 0
        %1550 = vperm.xlu0 %1549, %v1281
        %v1551 = vpop.permute.xlu0 %1550
        %1552 = vset.pattern.permute.xlu0 0
        %1553 = vperm.xlu0 %1552, %v1282
        %v1554 = vpop.permute.xlu0 %1553
        %1555 = vset.pattern.permute.xlu0 0
        %1556 = vperm.xlu0 %1555, %v1283
        %v1557 = vpop.permute.xlu0 %1556
        %1558 = vset.pattern.permute.xlu0 0
        %1559 = vperm.xlu0 %1558, %v1284
        %v1560 = vpop.permute.xlu0 %1559
        %1561 = vset.pattern.permute.xlu0 0
        %1562 = vperm.xlu0 %1561, %v1285
        %v1563 = vpop.permute.xlu0 %1562
        %1564 = vset.pattern.permute.xlu0 0
        %1565 = vperm.xlu0 %1564, %v1286
        %v1566 = vpop.permute.xlu0 %1565
        %1567 = vset.pattern.permute.xlu0 0
        %1568 = vperm.xlu0 %1567, %v1287
        %v1569 = vpop.permute.xlu0 %1568
        %1570 = vset.pattern.permute.xlu0 0
        %1571 = vperm.xlu0 %1570, %v1288
        %v1572 = vpop.permute.xlu0 %1571
        %1573 = vset.pattern.permute.xlu0 0
        %1574 = vperm.xlu0 %1573, %v1289
        %v1575 = vpop.permute.xlu0 %1574
        %1576 = vset.pattern.permute.xlu0 0
        %1577 = vperm.xlu0 %1576, %v1290
        %v1578 = vpop.permute.xlu0 %1577
        %1579 = vset.pattern.permute.xlu0 0
        %1580 = vperm.xlu0 %1579, %v1291
        %v1581 = vpop.permute.xlu0 %1580
        %vm1582 = vcmp.eq.s32.totalorder %v1293, %v1488
        %vm1583 = vcmp.eq.s32.totalorder %v1293, %v1491
        %vm1584 = vcmp.eq.s32.totalorder %v1293, %v1494
        %vm1585 = vcmp.eq.s32.totalorder %v1293, %v1497
        %vm1586 = vcmp.eq.s32.totalorder %v1293, %v1500
        %vm1587 = vcmp.eq.s32.totalorder %v1293, %v1503
        %vm1588 = vcmp.eq.s32.totalorder %v1293, %v1506
        %vm1589 = vcmp.eq.s32.totalorder %v1293, %v1509
        %vm1590 = vcmp.eq.s32.totalorder %v1293, %v1512
        %vm1591 = vcmp.eq.s32.totalorder %v1293, %v1515
        %vm1592 = vcmp.eq.s32.totalorder %v1293, %v1518
        %vm1593 = vcmp.eq.s32.totalorder %v1293, %v1521
        %vm1594 = vcmp.eq.s32.totalorder %v1293, %v1524
        %vm1595 = vcmp.eq.s32.totalorder %v1293, %v1527
        %vm1596 = vcmp.eq.s32.totalorder %v1293, %v1530
        %vm1597 = vcmp.eq.s32.totalorder %v1293, %v1533
        %vm1598 = vcmp.eq.s32.totalorder %v1293, %v1536
        %vm1599 = vcmp.eq.s32.totalorder %v1293, %v1539
        %vm1600 = vcmp.eq.s32.totalorder %v1293, %v1542
        %vm1601 = vcmp.eq.s32.totalorder %v1293, %v1545
        %vm1602 = vcmp.eq.s32.totalorder %v1293, %v1548
        %vm1603 = vcmp.eq.s32.totalorder %v1293, %v1551
        %vm1604 = vcmp.eq.s32.totalorder %v1293, %v1554
        %vm1605 = vcmp.eq.s32.totalorder %v1293, %v1557
        %vm1606 = vcmp.eq.s32.totalorder %v1293, %v1560
        %vm1607 = vcmp.eq.s32.totalorder %v1293, %v1563
        %vm1608 = vcmp.eq.s32.totalorder %v1293, %v1566
        %vm1609 = vcmp.eq.s32.totalorder %v1293, %v1569
        %vm1610 = vcmp.eq.s32.totalorder %v1293, %v1572
        %vm1611 = vcmp.eq.s32.totalorder %v1293, %v1575
        %vm1612 = vcmp.eq.s32.totalorder %v1293, %v1578
        %vm1613 = vcmp.eq.s32.totalorder %v1293, %v1581
        %v1614 = vsel %vm1582, 1, 0
        %v1615 = vsel %vm1583, 1, 0
        %v1616 = vsel %vm1584, 1, 0
        %v1617 = vsel %vm1585, 1, 0
        %v1618 = vsel %vm1586, 1, 0
        %v1619 = vsel %vm1587, 1, 0
        %v1620 = vsel %vm1588, 1, 0
        %v1621 = vsel %vm1589, 1, 0
        %v1622 = vsel %vm1590, 1, 0
        %v1623 = vsel %vm1591, 1, 0
        %v1624 = vsel %vm1592, 1, 0
        %v1625 = vsel %vm1593, 1, 0
        %v1626 = vsel %vm1594, 1, 0
        %v1627 = vsel %vm1595, 1, 0
        %v1628 = vsel %vm1596, 1, 0
        %v1629 = vsel %vm1597, 1, 0
        %v1630 = vsel %vm1598, 1, 0
        %v1631 = vsel %vm1599, 1, 0
        %v1632 = vsel %vm1600, 1, 0
        %v1633 = vsel %vm1601, 1, 0
        %v1634 = vsel %vm1602, 1, 0
        %v1635 = vsel %vm1603, 1, 0
        %v1636 = vsel %vm1604, 1, 0
        %v1637 = vsel %vm1605, 1, 0
        %v1638 = vsel %vm1606, 1, 0
        %v1639 = vsel %vm1607, 1, 0
        %v1640 = vsel %vm1608, 1, 0
        %v1641 = vsel %vm1609, 1, 0
        %v1642 = vsel %vm1610, 1, 0
        %v1643 = vsel %vm1611, 1, 0
        %v1644 = vsel %vm1612, 1, 0
        %v1645 = vsel %vm1613, 1, 0
        %v1646 = vcvt.s32.f32 %v1614
        %v1647 = vcvt.s32.f32 %v1615
        %v1648 = vcvt.s32.f32 %v1616
        %v1649 = vcvt.s32.f32 %v1617
        %v1650 = vcvt.s32.f32 %v1618
        %v1651 = vcvt.s32.f32 %v1619
        %v1652 = vcvt.s32.f32 %v1620
        %v1653 = vcvt.s32.f32 %v1621
        %v1654 = vcvt.s32.f32 %v1622
        %v1655 = vcvt.s32.f32 %v1623
        %v1656 = vcvt.s32.f32 %v1624
        %v1657 = vcvt.s32.f32 %v1625
        %v1658 = vcvt.s32.f32 %v1626
        %v1659 = vcvt.s32.f32 %v1627
        %v1660 = vcvt.s32.f32 %v1628
        %v1661 = vcvt.s32.f32 %v1629
        %v1662 = vcvt.s32.f32 %v1630
        %v1663 = vcvt.s32.f32 %v1631
        %v1664 = vcvt.s32.f32 %v1632
        %v1665 = vcvt.s32.f32 %v1633
        %v1666 = vcvt.s32.f32 %v1634
        %v1667 = vcvt.s32.f32 %v1635
        %v1668 = vcvt.s32.f32 %v1636
        %v1669 = vcvt.s32.f32 %v1637
        %v1670 = vcvt.s32.f32 %v1638
        %v1671 = vcvt.s32.f32 %v1639
        %v1672 = vcvt.s32.f32 %v1640
        %v1673 = vcvt.s32.f32 %v1641
        %v1674 = vcvt.s32.f32 %v1642
        %v1675 = vcvt.s32.f32 %v1643
        %v1676 = vcvt.s32.f32 %v1644
        %v1677 = vcvt.s32.f32 %v1645
        %v1678 = vld [vmem:[#allocation2] sm:$0xff]
        %v1679 = vld [vmem:[#allocation2 + $0x8] sm:$0xff]
        %v1680 = vld [vmem:[#allocation2 + $0x20] sm:$0xff]
        %v1681 = vld [vmem:[#allocation2 + $0x28] sm:$0xff]
        %v1682 = vld [vmem:[#allocation2 + $0x40] sm:$0xff]
        %v1683 = vld [vmem:[#allocation2 + $0x48] sm:$0xff]
        %v1684 = vld [vmem:[#allocation2 + $0x60] sm:$0xff]
        %v1685 = vld [vmem:[#allocation2 + $0x68] sm:$0xff]
        %vm1686 = vcmask 261120
        %v1688 = vsel %vm1686, %v1454, 0
        %v1691 = vsel %vm1686, %v1455, 0
        %v1694 = vsel %vm1686, %v1456, 0
        %v1697 = vsel %vm1686, %v1457, 0
        %v1700 = vsel %vm1686, %v1458, 0
        %v1703 = vsel %vm1686, %v1459, 0
        %v1706 = vsel %vm1686, %v1460, 0
        %v1709 = vsel %vm1686, %v1461, 0
        %v1712 = vsel %vm1686, %v1462, 0
        %v1715 = vsel %vm1686, %v1463, 0
        %v1718 = vsel %vm1686, %v1464, 0
        %v1721 = vsel %vm1686, %v1465, 0
        %v1724 = vsel %vm1686, %v1466, 0
        %v1727 = vsel %vm1686, %v1467, 0
        %v1730 = vsel %vm1686, %v1468, 0
        %v1733 = vsel %vm1686, %v1469, 0
        %v1736 = vsel %vm1686, %v1470, 0
        %v1739 = vsel %vm1686, %v1471, 0
        %v1742 = vsel %vm1686, %v1472, 0
        %v1745 = vsel %vm1686, %v1473, 0
        %v1748 = vsel %vm1686, %v1474, 0
        %v1751 = vsel %vm1686, %v1475, 0
        %v1754 = vsel %vm1686, %v1476, 0
        %v1757 = vsel %vm1686, %v1477, 0
        %v1760 = vsel %vm1686, %v1478, 0
        %v1763 = vsel %vm1686, %v1479, 0
        %v1766 = vsel %vm1686, %v1480, 0
        %v1769 = vsel %vm1686, %v1481, 0
        %v1772 = vsel %vm1686, %v1482, 0
        %v1775 = vsel %vm1686, %v1483, 0
        %v1778 = vsel %vm1686, %v1484, 0
        %v1781 = vsel %vm1686, %v1485, 0
        %1783 = vmatprep.subr.mxu0 %v1679
        %1784 = vmatpush1.msra.mxu0 %v1678
        %1785 = vmatprep.subr.mxu0 %v1681
        %1786 = vmatpush1.msra.mxu0 %v1680
        %1787 = vmatprep.subr.mxu0 %v1683
        %1788 = vmatpush1.msra.mxu0 %v1682
        %1789 = vmatprep.subr.mxu0 %v1685
        %1790 = vmatpush1.msra.mxu0 %v1684
        %1791 = vmatprep.subr.mxu0 0.0
        %1792 = vmatpush1.msra.mxu0 0.0
        %1793 = vmatprep.subr.mxu0 0.0
        %1794 = vmatpush1.msra.mxu0 0.0
        %1795 = vmatprep.subr.mxu0 0.0
        %1796 = vmatpush1.msra.mxu0 0.0
        %1797 = vmatprep.subr.mxu0 0.0
        %1798 = vmatpush1.msra.mxu0 0.0
        %1799 = vmatprep.subr.mxu0 0.0
        %1800 = vmatpush1.msra.mxu0 0.0
        %1801 = vmatprep.subr.mxu0 0.0
        %1802 = vmatpush1.msra.mxu0 0.0
        %1803 = vmatprep.subr.mxu0 0.0
        %1804 = vmatpush1.msra.mxu0 0.0
        %1805 = vmatprep.subr.mxu0 0.0
        %1806 = vmatpush1.msra.mxu0 0.0
        %1807 = vmatprep.subr.mxu0 0.0
        %1808 = vmatpush1.msra.mxu0 0.0
        %1809 = vmatprep.subr.mxu0 0.0
        %1810 = vmatpush1.msra.mxu0 0.0
        %1811 = vmatprep.subr.mxu0 0.0
        %1812 = vmatpush1.msra.mxu0 0.0
        %1813 = vmatprep.subr.mxu0 0.0
        %1814 = vmatpush1.msra.mxu0 0.0
        %1815 = vmatprep.subr.mxu0 0.0
        %1816 = vmatpush1.msra.mxu0 0.0
        %1817 = vmatprep.subr.mxu0 0.0
        %1818 = vmatpush1.msra.mxu0 0.0
        %1819 = vmatprep.subr.mxu0 0.0
        %1820 = vmatpush1.msra.mxu0 0.0
        %1821 = vmatprep.subr.mxu0 0.0
        %1822 = vmatpush1.msra.mxu0 0.0
        %1823 = vmatprep.subr.mxu0 0.0
        %1824 = vmatpush1.msra.mxu0 0.0
        %1825 = vmatprep.subr.mxu0 0.0
        %1826 = vmatpush1.msra.mxu0 0.0
        %1827 = vmatprep.subr.mxu0 0.0
        %1828 = vmatpush1.msra.mxu0 0.0
        %1829 = vmatprep.subr.mxu0 0.0
        %1830 = vmatpush1.msra.mxu0 0.0
        %1831 = vmatprep.subr.mxu0 0.0
        %1832 = vmatpush1.msra.mxu0 0.0
        %1833 = vmatprep.subr.mxu0 0.0
        %1834 = vmatpush1.msra.mxu0 0.0
        %1835 = vmatprep.subr.mxu0 0.0
        %1836 = vmatpush1.msra.mxu0 0.0
        %1837 = vmatprep.subr.mxu0 0.0
        %1838 = vmatpush1.msra.mxu0 0.0
        %1839 = vmatprep.subr.mxu0 0.0
        %1840 = vmatpush1.msra.mxu0 0.0
        %1841 = vmatprep.subr.mxu0 0.0
        %1842 = vmatpush1.msra.mxu0 0.0
        %1843 = vmatprep.subr.mxu0 0.0
        %1844 = vmatpush1.msra.mxu0 0.0
        %1845 = vmatprep.subr.mxu0 0.0
        %1846 = vmatpush1.msra.mxu0 0.0
        %1847 = vmatprep.mubr.f32.mxu0 0.0
        %1848 = vmatmul.mubr.f32.gmra.mrb[0].mxu0 %v1688
        %v1849 = vpop.f32.mrb[0].mxu0
        %v1850 = vadd.f32 0.0, %v1849
        %v1851 = vpop.f32.mrb[0].mxu0
        %v1852 = vadd.f32 0.0, %v1851
        %1853 = vmatprep.mubr.f32.mxu0 0.0
        %1854 = vmatmul.mubr.f32.gmra.mrb[0].mxu0 %v1691
        %v1855 = vpop.f32.mrb[0].mxu0
        %v1856 = vadd.f32 0.0, %v1855
        %v1857 = vpop.f32.mrb[0].mxu0
        %v1858 = vadd.f32 0.0, %v1857
        %1859 = vmatprep.mubr.f32.mxu0 0.0
        %1860 = vmatmul.mubr.f32.gmra.mrb[0].mxu0 %v1694
        %v1861 = vpop.f32.mrb[0].mxu0
        %v1862 = vadd.f32 0.0, %v1861
        %v1863 = vpop.f32.mrb[0].mxu0
        %v1864 = vadd.f32 0.0, %v1863
        %1865 = vmatprep.mubr.f32.mxu0 0.0
        %1866 = vmatmul.mubr.f32.gmra.mrb[0].mxu0 %v1697
        %v1867 = vpop.f32.mrb[0].mxu0
        %v1868 = vadd.f32 0.0, %v1867
        %v1869 = vpop.f32.mrb[0].mxu0
        %v1870 = vadd.f32 0.0, %v1869
        %1871 = vmatprep.mubr.f32.mxu0 0.0
        %1872 = vmatmul.mubr.f32.gmra.mrb[0].mxu0 %v1700
        %v1873 = vpop.f32.mrb[0].mxu0
        %v1874 = vadd.f32 0.0, %v1873
        %v1875 = vpop.f32.mrb[0].mxu0
        %v1876 = vadd.f32 0.0, %v1875
        %1877 = vmatprep.mubr.f32.mxu0 0.0
        %1878 = vmatmul.mubr.f32.gmra.mrb[0].mxu0 %v1703
        %v1879 = vpop.f32.mrb[0].mxu0
        %v1880 = vadd.f32 0.0, %v1879
        %v1881 = vpop.f32.mrb[0].mxu0
        %v1882 = vadd.f32 0.0, %v1881
        %1883 = vmatprep.mubr.f32.mxu0 0.0
        %1884 = vmatmul.mubr.f32.gmra.mrb[0].mxu0 %v1706
        %v1885 = vpop.f32.mrb[0].mxu0
        %v1886 = vadd.f32 0.0, %v1885
        %v1887 = vpop.f32.mrb[0].mxu0
        %v1888 = vadd.f32 0.0, %v1887
        %1889 = vmatprep.mubr.f32.mxu0 0.0
        %1890 = vmatmul.mubr.f32.gmra.mrb[0].mxu0 %v1709
        %v1891 = vpop.f32.mrb[0].mxu0
        %v1892 = vadd.f32 0.0, %v1891
        %v1893 = vpop.f32.mrb[0].mxu0
        %v1894 = vadd.f32 0.0, %v1893
        %1895 = vmatprep.mubr.f32.mxu0 0.0
        %1896 = vmatmul.mubr.f32.gmra.mrb[0].mxu0 %v1712
        %v1897 = vpop.f32.mrb[0].mxu0
        %v1898 = vadd.f32 0.0, %v1897
        %v1899 = vpop.f32.mrb[0].mxu0
        %v1900 = vadd.f32 0.0, %v1899
        %1901 = vmatprep.mubr.f32.mxu0 0.0
        %1902 = vmatmul.mubr.f32.gmra.mrb[0].mxu0 %v1715
        %v1903 = vpop.f32.mrb[0].mxu0
        %v1904 = vadd.f32 0.0, %v1903
        %v1905 = vpop.f32.mrb[0].mxu0
        %v1906 = vadd.f32 0.0, %v1905
        %1907 = vmatprep.mubr.f32.mxu0 0.0
        %1908 = vmatmul.mubr.f32.gmra.mrb[0].mxu0 %v1718
        %v1909 = vpop.f32.mrb[0].mxu0
        %v1910 = vadd.f32 0.0, %v1909
        %v1911 = vpop.f32.mrb[0].mxu0
        %v1912 = vadd.f32 0.0, %v1911
        %1913 = vmatprep.mubr.f32.mxu0 0.0
        %1914 = vmatmul.mubr.f32.gmra.mrb[0].mxu0 %v1721
        %v1915 = vpop.f32.mrb[0].mxu0
        %v1916 = vadd.f32 0.0, %v1915
        %v1917 = vpop.f32.mrb[0].mxu0
        %v1918 = vadd.f32 0.0, %v1917
        %1919 = vmatprep.mubr.f32.mxu0 0.0
        %1920 = vmatmul.mubr.f32.gmra.mrb[0].mxu0 %v1724
        %v1921 = vpop.f32.mrb[0].mxu0
        %v1922 = vadd.f32 0.0, %v1921
        %v1923 = vpop.f32.mrb[0].mxu0
        %v1924 = vadd.f32 0.0, %v1923
        %1925 = vmatprep.mubr.f32.mxu0 0.0
        %1926 = vmatmul.mubr.f32.gmra.mrb[0].mxu0 %v1727
        %v1927 = vpop.f32.mrb[0].mxu0
        %v1928 = vadd.f32 0.0, %v1927
        %v1929 = vpop.f32.mrb[0].mxu0
        %v1930 = vadd.f32 0.0, %v1929
        %1931 = vmatprep.mubr.f32.mxu0 0.0
        %1932 = vmatmul.mubr.f32.gmra.mrb[0].mxu0 %v1730
        %v1933 = vpop.f32.mrb[0].mxu0
        %v1934 = vadd.f32 0.0, %v1933
        %v1935 = vpop.f32.mrb[0].mxu0
        %v1936 = vadd.f32 0.0, %v1935
        %1937 = vmatprep.mubr.f32.mxu0 0.0
        %1938 = vmatmul.mubr.f32.gmra.mrb[0].mxu0 %v1733
        %v1939 = vpop.f32.mrb[0].mxu0
        %v1940 = vadd.f32 0.0, %v1939
        %v1941 = vpop.f32.mrb[0].mxu0
        %v1942 = vadd.f32 0.0, %v1941
        %1943 = vmatprep.mubr.f32.mxu0 0.0
        %1944 = vmatmul.mubr.f32.gmra.mrb[0].mxu0 %v1736
        %v1945 = vpop.f32.mrb[0].mxu0
        %v1946 = vadd.f32 0.0, %v1945
        %v1947 = vpop.f32.mrb[0].mxu0
        %v1948 = vadd.f32 0.0, %v1947
        %1949 = vmatprep.mubr.f32.mxu0 0.0
        %1950 = vmatmul.mubr.f32.gmra.mrb[0].mxu0 %v1739
        %v1951 = vpop.f32.mrb[0].mxu0
        %v1952 = vadd.f32 0.0, %v1951
        %v1953 = vpop.f32.mrb[0].mxu0
        %v1954 = vadd.f32 0.0, %v1953
        %1955 = vmatprep.mubr.f32.mxu0 0.0
        %1956 = vmatmul.mubr.f32.gmra.mrb[0].mxu0 %v1742
        %v1957 = vpop.f32.mrb[0].mxu0
        %v1958 = vadd.f32 0.0, %v1957
        %v1959 = vpop.f32.mrb[0].mxu0
        %v1960 = vadd.f32 0.0, %v1959
        %1961 = vmatprep.mubr.f32.mxu0 0.0
        %1962 = vmatmul.mubr.f32.gmra.mrb[0].mxu0 %v1745
        %v1963 = vpop.f32.mrb[0].mxu0
        %v1964 = vadd.f32 0.0, %v1963
        %v1965 = vpop.f32.mrb[0].mxu0
        %v1966 = vadd.f32 0.0, %v1965
        %1967 = vmatprep.mubr.f32.mxu0 0.0
        %1968 = vmatmul.mubr.f32.gmra.mrb[0].mxu0 %v1748
        %v1969 = vpop.f32.mrb[0].mxu0
        %v1970 = vadd.f32 0.0, %v1969
        %v1971 = vpop.f32.mrb[0].mxu0
        %v1972 = vadd.f32 0.0, %v1971
        %1973 = vmatprep.mubr.f32.mxu0 0.0
        %1974 = vmatmul.mubr.f32.gmra.mrb[0].mxu0 %v1751
        %v1975 = vpop.f32.mrb[0].mxu0
        %v1976 = vadd.f32 0.0, %v1975
        %v1977 = vpop.f32.mrb[0].mxu0
        %v1978 = vadd.f32 0.0, %v1977
        %1979 = vmatprep.mubr.f32.mxu0 0.0
        %1980 = vmatmul.mubr.f32.gmra.mrb[0].mxu0 %v1754
        %v1981 = vpop.f32.mrb[0].mxu0
        %v1982 = vadd.f32 0.0, %v1981
        %v1983 = vpop.f32.mrb[0].mxu0
        %v1984 = vadd.f32 0.0, %v1983
        %1985 = vmatprep.mubr.f32.mxu0 0.0
        %1986 = vmatmul.mubr.f32.gmra.mrb[0].mxu0 %v1757
        %v1987 = vpop.f32.mrb[0].mxu0
        %v1988 = vadd.f32 0.0, %v1987
        %v1989 = vpop.f32.mrb[0].mxu0
        %v1990 = vadd.f32 0.0, %v1989
        %1991 = vmatprep.mubr.f32.mxu0 0.0
        %1992 = vmatmul.mubr.f32.gmra.mrb[0].mxu0 %v1760
        %v1993 = vpop.f32.mrb[0].mxu0
        %v1994 = vadd.f32 0.0, %v1993
        %v1995 = vpop.f32.mrb[0].mxu0
        %v1996 = vadd.f32 0.0, %v1995
        %1997 = vmatprep.mubr.f32.mxu0 0.0
        %1998 = vmatmul.mubr.f32.gmra.mrb[0].mxu0 %v1763
        %v1999 = vpop.f32.mrb[0].mxu0
        %v2000 = vadd.f32 0.0, %v1999
        %v2001 = vpop.f32.mrb[0].mxu0
        %v2002 = vadd.f32 0.0, %v2001
        %2003 = vmatprep.mubr.f32.mxu0 0.0
        %2004 = vmatmul.mubr.f32.gmra.mrb[0].mxu0 %v1766
        %v2005 = vpop.f32.mrb[0].mxu0
        %v2006 = vadd.f32 0.0, %v2005
        %v2007 = vpop.f32.mrb[0].mxu0
        %v2008 = vadd.f32 0.0, %v2007
        %2009 = vmatprep.mubr.f32.mxu0 0.0
        %2010 = vmatmul.mubr.f32.gmra.mrb[0].mxu0 %v1769
        %v2011 = vpop.f32.mrb[0].mxu0
        %v2012 = vadd.f32 0.0, %v2011
        %v2013 = vpop.f32.mrb[0].mxu0
        %v2014 = vadd.f32 0.0, %v2013
        %2015 = vmatprep.mubr.f32.mxu0 0.0
        %2016 = vmatmul.mubr.f32.gmra.mrb[0].mxu0 %v1772
        %v2017 = vpop.f32.mrb[0].mxu0
        %v2018 = vadd.f32 0.0, %v2017
        %v2019 = vpop.f32.mrb[0].mxu0
        %v2020 = vadd.f32 0.0, %v2019
        %2021 = vmatprep.mubr.f32.mxu0 0.0
        %2022 = vmatmul.mubr.f32.gmra.mrb[0].mxu0 %v1775
        %v2023 = vpop.f32.mrb[0].mxu0
        %v2024 = vadd.f32 0.0, %v2023
        %v2025 = vpop.f32.mrb[0].mxu0
        %v2026 = vadd.f32 0.0, %v2025
        %2027 = vmatprep.mubr.f32.mxu0 0.0
        %2028 = vmatmul.mubr.f32.gmra.mrb[0].mxu0 %v1778
        %v2029 = vpop.f32.mrb[0].mxu0
        %v2030 = vadd.f32 0.0, %v2029
        %v2031 = vpop.f32.mrb[0].mxu0
        %v2032 = vadd.f32 0.0, %v2031
        %2033 = vmatprep.mubr.f32.mxu0 0.0
        %2034 = vmatmul.mubr.f32.gmra.mrb[0].mxu0 %v1781
        %v2035 = vpop.f32.mrb[0].mxu0
        %v2036 = vadd.f32 0.0, %v2035
        %v2037 = vpop.f32.mrb[0].mxu0
        %v2038 = vadd.f32 0.0, %v2037
        %2039 = vdwg.mxu0
        %v2040 = vld [vmem:[#allocation2 + $0x10] sm:$0xff]
        %v2041 = vld [vmem:[#allocation2 + $0x30] sm:$0xff]
        %v2042 = vld [vmem:[#allocation2 + $0x50] sm:$0xff]
        %v2043 = vld [vmem:[#allocation2 + $0x70] sm:$0xff]
        %v2045 = vsel %vm1686, %v1646, 0
        %v2048 = vsel %vm1686, %v1647, 0
        %v2051 = vsel %vm1686, %v1648, 0
        %v2054 = vsel %vm1686, %v1649, 0
        %v2057 = vsel %vm1686, %v1650, 0
        %v2060 = vsel %vm1686, %v1651, 0
        %v2063 = vsel %vm1686, %v1652, 0
        %v2066 = vsel %vm1686, %v1653, 0
        %v2069 = vsel %vm1686, %v1654, 0
        %v2072 = vsel %vm1686, %v1655, 0
        %v2075 = vsel %vm1686, %v1656, 0
        %v2078 = vsel %vm1686, %v1657, 0
        %v2081 = vsel %vm1686, %v1658, 0
        %v2084 = vsel %vm1686, %v1659, 0
        %v2087 = vsel %vm1686, %v1660, 0
        %v2090 = vsel %vm1686, %v1661, 0
        %v2093 = vsel %vm1686, %v1662, 0
        %v2096 = vsel %vm1686, %v1663, 0
        %v2099 = vsel %vm1686, %v1664, 0
        %v2102 = vsel %vm1686, %v1665, 0
        %v2105 = vsel %vm1686, %v1666, 0
        %v2108 = vsel %vm1686, %v1667, 0
        %v2111 = vsel %vm1686, %v1668, 0
        %v2114 = vsel %vm1686, %v1669, 0
        %v2117 = vsel %vm1686, %v1670, 0
        %v2120 = vsel %vm1686, %v1671, 0
        %v2123 = vsel %vm1686, %v1672, 0
        %v2126 = vsel %vm1686, %v1673, 0
        %v2129 = vsel %vm1686, %v1674, 0
        %v2132 = vsel %vm1686, %v1675, 0
        %v2135 = vsel %vm1686, %v1676, 0
        %v2138 = vsel %vm1686, %v1677, 0
        %2140 = vmatprep.subr.mxu0 0.0
        %2141 = vmatpush1.msra.mxu0 %v2040
        %2142 = vmatprep.subr.mxu0 0.0
        %2143 = vmatpush1.msra.mxu0 %v2041
        %2144 = vmatprep.subr.mxu0 0.0
        %2145 = vmatpush1.msra.mxu0 %v2042
        %2146 = vmatprep.subr.mxu0 0.0
        %2147 = vmatpush1.msra.mxu0 %v2043
        %2148 = vmatprep.subr.mxu0 0.0
        %2149 = vmatpush1.msra.mxu0 0.0
        %2150 = vmatprep.subr.mxu0 0.0
        %2151 = vmatpush1.msra.mxu0 0.0
        %2152 = vmatprep.subr.mxu0 0.0
        %2153 = vmatpush1.msra.mxu0 0.0
        %2154 = vmatprep.subr.mxu0 0.0
        %2155 = vmatpush1.msra.mxu0 0.0
        %2156 = vmatprep.subr.mxu0 0.0
        %2157 = vmatpush1.msra.mxu0 0.0
        %2158 = vmatprep.subr.mxu0 0.0
        %2159 = vmatpush1.msra.mxu0 0.0
        %2160 = vmatprep.subr.mxu0 0.0
        %2161 = vmatpush1.msra.mxu0 0.0
        %2162 = vmatprep.subr.mxu0 0.0
        %2163 = vmatpush1.msra.mxu0 0.0
        %2164 = vmatprep.subr.mxu0 0.0
        %2165 = vmatpush1.msra.mxu0 0.0
        %2166 = vmatprep.subr.mxu0 0.0
        %2167 = vmatpush1.msra.mxu0 0.0
        %2168 = vmatprep.subr.mxu0 0.0
        %2169 = vmatpush1.msra.mxu0 0.0
        %2170 = vmatprep.subr.mxu0 0.0
        %2171 = vmatpush1.msra.mxu0 0.0
        %2172 = vmatprep.subr.mxu0 0.0
        %2173 = vmatpush1.msra.mxu0 0.0
        %2174 = vmatprep.subr.mxu0 0.0
        %2175 = vmatpush1.msra.mxu0 0.0
        %2176 = vmatprep.subr.mxu0 0.0
        %2177 = vmatpush1.msra.mxu0 0.0
        %2178 = vmatprep.subr.mxu0 0.0
        %2179 = vmatpush1.msra.mxu0 0.0
        %2180 = vmatprep.subr.mxu0 0.0
        %2181 = vmatpush1.msra.mxu0 0.0
        %2182 = vmatprep.subr.mxu0 0.0
        %2183 = vmatpush1.msra.mxu0 0.0
        %2184 = vmatprep.subr.mxu0 0.0
        %2185 = vmatpush1.msra.mxu0 0.0
        %2186 = vmatprep.subr.mxu0 0.0
        %2187 = vmatpush1.msra.mxu0 0.0
        %2188 = vmatprep.subr.mxu0 0.0
        %2189 = vmatpush1.msra.mxu0 0.0
        %2190 = vmatprep.subr.mxu0 0.0
        %2191 = vmatpush1.msra.mxu0 0.0
        %2192 = vmatprep.subr.mxu0 0.0
        %2193 = vmatpush1.msra.mxu0 0.0
        %2194 = vmatprep.subr.mxu0 0.0
        %2195 = vmatpush1.msra.mxu0 0.0
        %2196 = vmatprep.subr.mxu0 0.0
        %2197 = vmatpush1.msra.mxu0 0.0
        %2198 = vmatprep.subr.mxu0 0.0
        %2199 = vmatpush1.msra.mxu0 0.0
        %2200 = vmatprep.subr.mxu0 0.0
        %2201 = vmatpush1.msra.mxu0 0.0
        %2202 = vmatprep.subr.mxu0 0.0
        %2203 = vmatpush1.msra.mxu0 0.0
        %2204 = vmatprep.mubr.f32.mxu0 0.0
        %2205 = vmatmul.mubr.f32.gmra.mrb[0].mxu0 %v2045
        %v2206 = vpop.f32.mrb[0].mxu0
        %v2207 = vadd.f32 0.0, %v2206
        %v2208 = vpop.f32.mrb[0].mxu0
        %2209 = vmatprep.mubr.f32.mxu0 0.0
        %2210 = vmatmul.mubr.f32.gmra.mrb[0].mxu0 %v2048
        %v2211 = vpop.f32.mrb[0].mxu0
        %v2212 = vadd.f32 0.0, %v2211
        %v2213 = vpop.f32.mrb[0].mxu0
        %2214 = vmatprep.mubr.f32.mxu0 0.0
        %2215 = vmatmul.mubr.f32.gmra.mrb[0].mxu0 %v2051
        %v2216 = vpop.f32.mrb[0].mxu0
        %v2217 = vadd.f32 0.0, %v2216
        %v2218 = vpop.f32.mrb[0].mxu0
        %2219 = vmatprep.mubr.f32.mxu0 0.0
        %2220 = vmatmul.mubr.f32.gmra.mrb[0].mxu0 %v2054
        %v2221 = vpop.f32.mrb[0].mxu0
        %v2222 = vadd.f32 0.0, %v2221
        %v2223 = vpop.f32.mrb[0].mxu0
        %2224 = vmatprep.mubr.f32.mxu0 0.0
        %2225 = vmatmul.mubr.f32.gmra.mrb[0].mxu0 %v2057
        %v2226 = vpop.f32.mrb[0].mxu0
        %v2227 = vadd.f32 0.0, %v2226
        %v2228 = vpop.f32.mrb[0].mxu0
        %2229 = vmatprep.mubr.f32.mxu0 0.0
        %2230 = vmatmul.mubr.f32.gmra.mrb[0].mxu0 %v2060
        %v2231 = vpop.f32.mrb[0].mxu0
        %v2232 = vadd.f32 0.0, %v2231
        %v2233 = vpop.f32.mrb[0].mxu0
        %2234 = vmatprep.mubr.f32.mxu0 0.0
        %2235 = vmatmul.mubr.f32.gmra.mrb[0].mxu0 %v2063
        %v2236 = vpop.f32.mrb[0].mxu0
        %v2237 = vadd.f32 0.0, %v2236
        %v2238 = vpop.f32.mrb[0].mxu0
        %2239 = vmatprep.mubr.f32.mxu0 0.0
        %2240 = vmatmul.mubr.f32.gmra.mrb[0].mxu0 %v2066
        %v2241 = vpop.f32.mrb[0].mxu0
        %v2242 = vadd.f32 0.0, %v2241
        %v2243 = vpop.f32.mrb[0].mxu0
        %2244 = vmatprep.mubr.f32.mxu0 0.0
        %2245 = vmatmul.mubr.f32.gmra.mrb[0].mxu0 %v2069
        %v2246 = vpop.f32.mrb[0].mxu0
        %v2247 = vadd.f32 0.0, %v2246
        %v2248 = vpop.f32.mrb[0].mxu0
        %2249 = vmatprep.mubr.f32.mxu0 0.0
        %2250 = vmatmul.mubr.f32.gmra.mrb[0].mxu0 %v2072
        %v2251 = vpop.f32.mrb[0].mxu0
        %v2252 = vadd.f32 0.0, %v2251
        %v2253 = vpop.f32.mrb[0].mxu0
        %2254 = vmatprep.mubr.f32.mxu0 0.0
        %2255 = vmatmul.mubr.f32.gmra.mrb[0].mxu0 %v2075
        %v2256 = vpop.f32.mrb[0].mxu0
        %v2257 = vadd.f32 0.0, %v2256
        %v2258 = vpop.f32.mrb[0].mxu0
        %2259 = vmatprep.mubr.f32.mxu0 0.0
        %2260 = vmatmul.mubr.f32.gmra.mrb[0].mxu0 %v2078
        %v2261 = vpop.f32.mrb[0].mxu0
        %v2262 = vadd.f32 0.0, %v2261
        %v2263 = vpop.f32.mrb[0].mxu0
        %2264 = vmatprep.mubr.f32.mxu0 0.0
        %2265 = vmatmul.mubr.f32.gmra.mrb[0].mxu0 %v2081
        %v2266 = vpop.f32.mrb[0].mxu0
        %v2267 = vadd.f32 0.0, %v2266
        %v2268 = vpop.f32.mrb[0].mxu0
        %2269 = vmatprep.mubr.f32.mxu0 0.0
        %2270 = vmatmul.mubr.f32.gmra.mrb[0].mxu0 %v2084
        %v2271 = vpop.f32.mrb[0].mxu0
        %v2272 = vadd.f32 0.0, %v2271
        %v2273 = vpop.f32.mrb[0].mxu0
        %2274 = vmatprep.mubr.f32.mxu0 0.0
        %2275 = vmatmul.mubr.f32.gmra.mrb[0].mxu0 %v2087
        %v2276 = vpop.f32.mrb[0].mxu0
        %v2277 = vadd.f32 0.0, %v2276
        %v2278 = vpop.f32.mrb[0].mxu0
        %2279 = vmatprep.mubr.f32.mxu0 0.0
        %2280 = vmatmul.mubr.f32.gmra.mrb[0].mxu0 %v2090
        %v2281 = vpop.f32.mrb[0].mxu0
        %v2282 = vadd.f32 0.0, %v2281
        %v2283 = vpop.f32.mrb[0].mxu0
        %2284 = vmatprep.mubr.f32.mxu0 0.0
        %2285 = vmatmul.mubr.f32.gmra.mrb[0].mxu0 %v2093
        %v2286 = vpop.f32.mrb[0].mxu0
        %v2287 = vadd.f32 0.0, %v2286
        %v2288 = vpop.f32.mrb[0].mxu0
        %2289 = vmatprep.mubr.f32.mxu0 0.0
        %2290 = vmatmul.mubr.f32.gmra.mrb[0].mxu0 %v2096
        %v2291 = vpop.f32.mrb[0].mxu0
        %v2292 = vadd.f32 0.0, %v2291
        %v2293 = vpop.f32.mrb[0].mxu0
        %2294 = vmatprep.mubr.f32.mxu0 0.0
        %2295 = vmatmul.mubr.f32.gmra.mrb[0].mxu0 %v2099
        %v2296 = vpop.f32.mrb[0].mxu0
        %v2297 = vadd.f32 0.0, %v2296
        %v2298 = vpop.f32.mrb[0].mxu0
        %2299 = vmatprep.mubr.f32.mxu0 0.0
        %2300 = vmatmul.mubr.f32.gmra.mrb[0].mxu0 %v2102
        %v2301 = vpop.f32.mrb[0].mxu0
        %v2302 = vadd.f32 0.0, %v2301
        %v2303 = vpop.f32.mrb[0].mxu0
        %2304 = vmatprep.mubr.f32.mxu0 0.0
        %2305 = vmatmul.mubr.f32.gmra.mrb[0].mxu0 %v2105
        %v2306 = vpop.f32.mrb[0].mxu0
        %v2307 = vadd.f32 0.0, %v2306
        %v2308 = vpop.f32.mrb[0].mxu0
        %2309 = vmatprep.mubr.f32.mxu0 0.0
        %2310 = vmatmul.mubr.f32.gmra.mrb[0].mxu0 %v2108
        %v2311 = vpop.f32.mrb[0].mxu0
        %v2312 = vadd.f32 0.0, %v2311
        %v2313 = vpop.f32.mrb[0].mxu0
        %2314 = vmatprep.mubr.f32.mxu0 0.0
        %2315 = vmatmul.mubr.f32.gmra.mrb[0].mxu0 %v2111
        %v2316 = vpop.f32.mrb[0].mxu0
        %v2317 = vadd.f32 0.0, %v2316
        %v2318 = vpop.f32.mrb[0].mxu0
        %2319 = vmatprep.mubr.f32.mxu0 0.0
        %2320 = vmatmul.mubr.f32.gmra.mrb[0].mxu0 %v2114
        %v2321 = vpop.f32.mrb[0].mxu0
        %v2322 = vadd.f32 0.0, %v2321
        %v2323 = vpop.f32.mrb[0].mxu0
        %2324 = vmatprep.mubr.f32.mxu0 0.0
        %2325 = vmatmul.mubr.f32.gmra.mrb[0].mxu0 %v2117
        %v2326 = vpop.f32.mrb[0].mxu0
        %v2327 = vadd.f32 0.0, %v2326
        %v2328 = vpop.f32.mrb[0].mxu0
        %2329 = vmatprep.mubr.f32.mxu0 0.0
        %2330 = vmatmul.mubr.f32.gmra.mrb[0].mxu0 %v2120
        %v2331 = vpop.f32.mrb[0].mxu0
        %v2332 = vadd.f32 0.0, %v2331
        %v2333 = vpop.f32.mrb[0].mxu0
        %2334 = vmatprep.mubr.f32.mxu0 0.0
        %2335 = vmatmul.mubr.f32.gmra.mrb[0].mxu0 %v2123
        %v2336 = vpop.f32.mrb[0].mxu0
        %v2337 = vadd.f32 0.0, %v2336
        %v2338 = vpop.f32.mrb[0].mxu0
        %2339 = vmatprep.mubr.f32.mxu0 0.0
        %2340 = vmatmul.mubr.f32.gmra.mrb[0].mxu0 %v2126
        %v2341 = vpop.f32.mrb[0].mxu0
        %v2342 = vadd.f32 0.0, %v2341
        %v2343 = vpop.f32.mrb[0].mxu0
        %2344 = vmatprep.mubr.f32.mxu0 0.0
        %2345 = vmatmul.mubr.f32.gmra.mrb[0].mxu0 %v2129
        %v2346 = vpop.f32.mrb[0].mxu0
        %v2347 = vadd.f32 0.0, %v2346
        %v2348 = vpop.f32.mrb[0].mxu0
        %2349 = vmatprep.mubr.f32.mxu0 0.0
        %2350 = vmatmul.mubr.f32.gmra.mrb[0].mxu0 %v2132
        %v2351 = vpop.f32.mrb[0].mxu0
        %v2352 = vadd.f32 0.0, %v2351
        %v2353 = vpop.f32.mrb[0].mxu0
        %2354 = vmatprep.mubr.f32.mxu0 0.0
        %2355 = vmatmul.mubr.f32.gmra.mrb[0].mxu0 %v2135
        %v2356 = vpop.f32.mrb[0].mxu0
        %v2357 = vadd.f32 0.0, %v2356
        %v2358 = vpop.f32.mrb[0].mxu0
        %2359 = vmatprep.mubr.f32.mxu0 0.0
        %2360 = vmatmul.mubr.f32.gmra.mrb[0].mxu0 %v2138
        %v2361 = vpop.f32.mrb[0].mxu0
        %v2362 = vadd.f32 0.0, %v2361
        %v2363 = vpop.f32.mrb[0].mxu0
        %2364 = vdwg.mxu0
        %v2365 = vadd.f32 %v1852, %v2207
        %v2366 = vadd.f32 %v1858, %v2212
        %v2367 = vadd.f32 %v1864, %v2217
        %v2368 = vadd.f32 %v1870, %v2222
        %v2369 = vadd.f32 %v1876, %v2227
        %v2370 = vadd.f32 %v1882, %v2232
        %v2371 = vadd.f32 %v1888, %v2237
        %v2372 = vadd.f32 %v1894, %v2242
        %v2373 = vadd.f32 %v1900, %v2247
        %v2374 = vadd.f32 %v1906, %v2252
        %v2375 = vadd.f32 %v1912, %v2257
        %v2376 = vadd.f32 %v1918, %v2262
        %v2377 = vadd.f32 %v1924, %v2267
        %v2378 = vadd.f32 %v1930, %v2272
        %v2379 = vadd.f32 %v1936, %v2277
        %v2380 = vadd.f32 %v1942, %v2282
        %v2381 = vadd.f32 %v1948, %v2287
        %v2382 = vadd.f32 %v1954, %v2292
        %v2383 = vadd.f32 %v1960, %v2297
        %v2384 = vadd.f32 %v1966, %v2302
        %v2385 = vadd.f32 %v1972, %v2307
        %v2386 = vadd.f32 %v1978, %v2312
        %v2387 = vadd.f32 %v1984, %v2317
        %v2388 = vadd.f32 %v1990, %v2322
        %v2389 = vadd.f32 %v1996, %v2327
        %v2390 = vadd.f32 %v2002, %v2332
        %v2391 = vadd.f32 %v2008, %v2337
        %v2392 = vadd.f32 %v2014, %v2342
        %v2393 = vadd.f32 %v2020, %v2347
        %v2394 = vadd.f32 %v2026, %v2352
        %v2395 = vadd.f32 %v2032, %v2357
        %v2396 = vadd.f32 %v2038, %v2362
        %v2397 = vadd.f32 %v2365, %v1070
        %v2398 = vadd.f32 %v2366, %v1075
        %v2399 = vadd.f32 %v2367, %v1080
        %v2400 = vadd.f32 %v2368, %v1085
        %v2401 = vadd.f32 %v2369, %v1090
        %v2402 = vadd.f32 %v2370, %v1095
        %v2403 = vadd.f32 %v2371, %v1100
        %v2404 = vadd.f32 %v2372, %v1105
        %v2405 = vadd.f32 %v2373, %v1110
        %v2406 = vadd.f32 %v2374, %v1115
        %v2407 = vadd.f32 %v2375, %v1120
        %v2408 = vadd.f32 %v2376, %v1125
        %v2409 = vadd.f32 %v2377, %v1130
        %v2410 = vadd.f32 %v2378, %v1135
        %v2411 = vadd.f32 %v2379, %v1140
        %v2412 = vadd.f32 %v2380, %v1145
        %v2413 = vadd.f32 %v2381, %v1150
        %v2414 = vadd.f32 %v2382, %v1155
        %v2415 = vadd.f32 %v2383, %v1160
        %v2416 = vadd.f32 %v2384, %v1165
        %v2417 = vadd.f32 %v2385, %v1170
        %v2418 = vadd.f32 %v2386, %v1175
        %v2419 = vadd.f32 %v2387, %v1180
        %v2420 = vadd.f32 %v2388, %v1185
        %v2421 = vadd.f32 %v2389, %v1190
        %v2422 = vadd.f32 %v2390, %v1195
        %v2423 = vadd.f32 %v2391, %v1200
        %v2424 = vadd.f32 %v2392, %v1205
        %v2425 = vadd.f32 %v2393, %v1210
        %v2426 = vadd.f32 %v2394, %v1215
        %v2427 = vadd.f32 %v2395, %v1220
        %v2428 = vadd.f32 %v2396, %v1225
        %v2429 = vxor.u32 %v2397, 2147483648
        %v2430 = vxor.u32 %v2398, 2147483648
        %v2431 = vxor.u32 %v2399, 2147483648
        %v2432 = vxor.u32 %v2400, 2147483648
        %v2433 = vxor.u32 %v2401, 2147483648
        %v2434 = vxor.u32 %v2402, 2147483648
        %v2435 = vxor.u32 %v2403, 2147483648
        %v2436 = vxor.u32 %v2404, 2147483648
        %v2437 = vxor.u32 %v2405, 2147483648
        %v2438 = vxor.u32 %v2406, 2147483648
        %v2439 = vxor.u32 %v2407, 2147483648
        %v2440 = vxor.u32 %v2408, 2147483648
        %v2441 = vxor.u32 %v2409, 2147483648
        %v2442 = vxor.u32 %v2410, 2147483648
        %v2443 = vxor.u32 %v2411, 2147483648
        %v2444 = vxor.u32 %v2412, 2147483648
        %v2445 = vxor.u32 %v2413, 2147483648
        %v2446 = vxor.u32 %v2414, 2147483648
        %v2447 = vxor.u32 %v2415, 2147483648
        %v2448 = vxor.u32 %v2416, 2147483648
        %v2449 = vxor.u32 %v2417, 2147483648
        %v2450 = vxor.u32 %v2418, 2147483648
        %v2451 = vxor.u32 %v2419, 2147483648
        %v2452 = vxor.u32 %v2420, 2147483648
        %v2453 = vxor.u32 %v2421, 2147483648
        %v2454 = vxor.u32 %v2422, 2147483648
        %v2455 = vxor.u32 %v2423, 2147483648
        %v2456 = vxor.u32 %v2424, 2147483648
        %v2457 = vxor.u32 %v2425, 2147483648
        %v2458 = vxor.u32 %v2426, 2147483648
        %v2459 = vxor.u32 %v2427, 2147483648
        %v2460 = vxor.u32 %v2428, 2147483648
        %v2461 = vmul.f32 %v2429, 1.442695
        %v2462 = vpow.pop %v2461
        %v2463 = vmul.f32 %v2430, 1.442695
        %v2464 = vpow.pop %v2463
        %v2465 = vmul.f32 %v2431, 1.442695
        %v2466 = vpow.pop %v2465
        %v2467 = vmul.f32 %v2432, 1.442695
        %v2468 = vpow.pop %v2467
        %v2469 = vmul.f32 %v2433, 1.442695
        %v2470 = vpow.pop %v2469
        %v2471 = vmul.f32 %v2434, 1.442695
        %v2472 = vpow.pop %v2471
        %v2473 = vmul.f32 %v2435, 1.442695
        %v2474 = vpow.pop %v2473
        %v2475 = vmul.f32 %v2436, 1.442695
        %v2476 = vpow.pop %v2475
        %v2477 = vmul.f32 %v2437, 1.442695
        %v2478 = vpow.pop %v2477
        %v2479 = vmul.f32 %v2438, 1.442695
        %v2480 = vpow.pop %v2479
        %v2481 = vmul.f32 %v2439, 1.442695
        %v2482 = vpow.pop %v2481
        %v2483 = vmul.f32 %v2440, 1.442695
        %v2484 = vpow.pop %v2483
        %v2485 = vmul.f32 %v2441, 1.442695
        %v2486 = vpow.pop %v2485
        %v2487 = vmul.f32 %v2442, 1.442695
        %v2488 = vpow.pop %v2487
        %v2489 = vmul.f32 %v2443, 1.442695
        %v2490 = vpow.pop %v2489
        %v2491 = vmul.f32 %v2444, 1.442695
        %v2492 = vpow.pop %v2491
        %v2493 = vmul.f32 %v2445, 1.442695
        %v2494 = vpow.pop %v2493
        %v2495 = vmul.f32 %v2446, 1.442695
        %v2496 = vpow.pop %v2495
        %v2497 = vmul.f32 %v2447, 1.442695
        %v2498 = vpow.pop %v2497
        %v2499 = vmul.f32 %v2448, 1.442695
        %v2500 = vpow.pop %v2499
        %v2501 = vmul.f32 %v2449, 1.442695
        %v2502 = vpow.pop %v2501
        %v2503 = vmul.f32 %v2450, 1.442695
        %v2504 = vpow.pop %v2503
        %v2505 = vmul.f32 %v2451, 1.442695
        %v2506 = vpow.pop %v2505
        %v2507 = vmul.f32 %v2452, 1.442695
        %v2508 = vpow.pop %v2507
        %v2509 = vmul.f32 %v2453, 1.442695
        %v2510 = vpow.pop %v2509
        %v2511 = vmul.f32 %v2454, 1.442695
        %v2512 = vpow.pop %v2511
        %v2513 = vmul.f32 %v2455, 1.442695
        %v2514 = vpow.pop %v2513
        %v2515 = vmul.f32 %v2456, 1.442695
        %v2516 = vpow.pop %v2515
        %v2517 = vmul.f32 %v2457, 1.442695
        %v2518 = vpow.pop %v2517
        %v2519 = vmul.f32 %v2458, 1.442695
        %v2520 = vpow.pop %v2519
        %v2521 = vmul.f32 %v2459, 1.442695
        %v2522 = vpow.pop %v2521
        %v2523 = vmul.f32 %v2460, 1.442695
        %v2524 = vpow.pop %v2523
        %v2525 = vadd.f32 %v2462, 1.0
        %v2526 = vadd.f32 %v2464, 1.0
        %v2527 = vadd.f32 %v2466, 1.0
        %v2528 = vadd.f32 %v2468, 1.0
        %v2529 = vadd.f32 %v2470, 1.0
        %v2530 = vadd.f32 %v2472, 1.0
        %v2531 = vadd.f32 %v2474, 1.0
        %v2532 = vadd.f32 %v2476, 1.0
        %v2533 = vadd.f32 %v2478, 1.0
        %v2534 = vadd.f32 %v2480, 1.0
        %v2535 = vadd.f32 %v2482, 1.0
        %v2536 = vadd.f32 %v2484, 1.0
        %v2537 = vadd.f32 %v2486, 1.0
        %v2538 = vadd.f32 %v2488, 1.0
        %v2539 = vadd.f32 %v2490, 1.0
        %v2540 = vadd.f32 %v2492, 1.0
        %v2541 = vadd.f32 %v2494, 1.0
        %v2542 = vadd.f32 %v2496, 1.0
        %v2543 = vadd.f32 %v2498, 1.0
        %v2544 = vadd.f32 %v2500, 1.0
        %v2545 = vadd.f32 %v2502, 1.0
        %v2546 = vadd.f32 %v2504, 1.0
        %v2547 = vadd.f32 %v2506, 1.0
        %v2548 = vadd.f32 %v2508, 1.0
        %v2549 = vadd.f32 %v2510, 1.0
        %v2550 = vadd.f32 %v2512, 1.0
        %v2551 = vadd.f32 %v2514, 1.0
        %v2552 = vadd.f32 %v2516, 1.0
        %v2553 = vadd.f32 %v2518, 1.0
        %v2554 = vadd.f32 %v2520, 1.0
        %v2555 = vadd.f32 %v2522, 1.0
        %v2556 = vadd.f32 %v2524, 1.0
        %v2557 = vrcp.pop %v2525
        %v2558 = vmul.f32 1.0, %v2557
        %v2559 = vrcp.pop %v2526
        %v2560 = vmul.f32 1.0, %v2559
        %v2561 = vrcp.pop %v2527
        %v2562 = vmul.f32 1.0, %v2561
        %v2563 = vrcp.pop %v2528
        %v2564 = vmul.f32 1.0, %v2563
        %v2565 = vrcp.pop %v2529
        %v2566 = vmul.f32 1.0, %v2565
        %v2567 = vrcp.pop %v2530
        %v2568 = vmul.f32 1.0, %v2567
        %v2569 = vrcp.pop %v2531
        %v2570 = vmul.f32 1.0, %v2569
        %v2571 = vrcp.pop %v2532
        %v2572 = vmul.f32 1.0, %v2571
        %v2573 = vrcp.pop %v2533
        %v2574 = vmul.f32 1.0, %v2573
        %v2575 = vrcp.pop %v2534
        %v2576 = vmul.f32 1.0, %v2575
        %v2577 = vrcp.pop %v2535
        %v2578 = vmul.f32 1.0, %v2577
        %v2579 = vrcp.pop %v2536
        %v2580 = vmul.f32 1.0, %v2579
        %v2581 = vrcp.pop %v2537
        %v2582 = vmul.f32 1.0, %v2581
        %v2583 = vrcp.pop %v2538
        %v2584 = vmul.f32 1.0, %v2583
        %v2585 = vrcp.pop %v2539
        %v2586 = vmul.f32 1.0, %v2585
        %v2587 = vrcp.pop %v2540
        %v2588 = vmul.f32 1.0, %v2587
        %v2589 = vrcp.pop %v2541
        %v2590 = vmul.f32 1.0, %v2589
        %v2591 = vrcp.pop %v2542
        %v2592 = vmul.f32 1.0, %v2591
        %v2593 = vrcp.pop %v2543
        %v2594 = vmul.f32 1.0, %v2593
        %v2595 = vrcp.pop %v2544
        %v2596 = vmul.f32 1.0, %v2595
        %v2597 = vrcp.pop %v2545
        %v2598 = vmul.f32 1.0, %v2597
        %v2599 = vrcp.pop %v2546
        %v2600 = vmul.f32 1.0, %v2599
        %v2601 = vrcp.pop %v2547
        %v2602 = vmul.f32 1.0, %v2601
        %v2603 = vrcp.pop %v2548
        %v2604 = vmul.f32 1.0, %v2603
        %v2605 = vrcp.pop %v2549
        %v2606 = vmul.f32 1.0, %v2605
        %v2607 = vrcp.pop %v2550
        %v2608 = vmul.f32 1.0, %v2607
        %v2609 = vrcp.pop %v2551
        %v2610 = vmul.f32 1.0, %v2609
        %v2611 = vrcp.pop %v2552
        %v2612 = vmul.f32 1.0, %v2611
        %v2613 = vrcp.pop %v2553
        %v2614 = vmul.f32 1.0, %v2613
        %v2615 = vrcp.pop %v2554
        %v2616 = vmul.f32 1.0, %v2615
        %v2617 = vrcp.pop %v2555
        %v2618 = vmul.f32 1.0, %v2617
        %v2619 = vrcp.pop %v2556
        %v2620 = vmul.f32 1.0, %v2619
        %v2621 = vmul.f32 %v2558, %v1850
        %v2622 = vmul.f32 %v2560, %v1856
        %v2623 = vmul.f32 %v2562, %v1862
        %v2624 = vmul.f32 %v2564, %v1868
        %v2625 = vmul.f32 %v2566, %v1874
        %v2626 = vmul.f32 %v2568, %v1880
        %v2627 = vmul.f32 %v2570, %v1886
        %v2628 = vmul.f32 %v2572, %v1892
        %v2629 = vmul.f32 %v2574, %v1898
        %v2630 = vmul.f32 %v2576, %v1904
        %v2631 = vmul.f32 %v2578, %v1910
        %v2632 = vmul.f32 %v2580, %v1916
        %v2633 = vmul.f32 %v2582, %v1922
        %v2634 = vmul.f32 %v2584, %v1928
        %v2635 = vmul.f32 %v2586, %v1934
        %v2636 = vmul.f32 %v2588, %v1940
        %v2637 = vmul.f32 %v2590, %v1946
        %v2638 = vmul.f32 %v2592, %v1952
        %v2639 = vmul.f32 %v2594, %v1958
        %v2640 = vmul.f32 %v2596, %v1964
        %v2641 = vmul.f32 %v2598, %v1970
        %v2642 = vmul.f32 %v2600, %v1976
        %v2643 = vmul.f32 %v2602, %v1982
        %v2644 = vmul.f32 %v2604, %v1988
        %v2645 = vmul.f32 %v2606, %v1994
        %v2646 = vmul.f32 %v2608, %v2000
        %v2647 = vmul.f32 %v2610, %v2006
        %v2648 = vmul.f32 %v2612, %v2012
        %v2649 = vmul.f32 %v2614, %v2018
        %v2650 = vmul.f32 %v2616, %v2024
        %v2651 = vmul.f32 %v2618, %v2030
        %v2652 = vmul.f32 %v2620, %v2036
        %v2653 = vld [vmem:[%s518] sm:$0x3]
        %v2654 = vlaneseq
        %v2655 = vshrl.u32 %v2654, 7
        %v2656 = vadd.s32 %v2655, 8
        %v2657 = vadd.s32 %v2655, 16
        %v2658 = vadd.s32 %v2655, 24
        %v2659 = vlaneseq
        %v2660 = vshrl.u32 %v2659, 7
        %v2661 = vsub.s32 0, %v2660
        %v2662 = vrot.slane %v2653, %v2661
        %v2663 = vlaneseq
        %v2664 = vshrl.u32 %v2663, 7
        %v2665 = vsub.s32 1, %v2664
        %v2666 = vrot.slane %v2653, %v2665
        %vm2667 = vcmp.eq.s32.totalorder %v2655, %v2662
        %vm2668 = vcmp.eq.s32.totalorder %v2655, %v2666
        %vm2669 = vcmp.eq.s32.totalorder %v2656, %v2662
        %vm2670 = vcmp.eq.s32.totalorder %v2656, %v2666
        %vm2671 = vcmp.eq.s32.totalorder %v2657, %v2662
        %vm2672 = vcmp.eq.s32.totalorder %v2657, %v2666
        %vm2673 = vcmp.eq.s32.totalorder %v2658, %v2662
        %vm2674 = vcmp.eq.s32.totalorder %v2658, %v2666
        %v2675 = vsel %vm2667, 1, 0
        %v2676 = vsel %vm2668, 1, 0
        %v2677 = vsel %vm2669, 1, 0
        %v2678 = vsel %vm2670, 1, 0
        %v2679 = vsel %vm2671, 1, 0
        %v2680 = vsel %vm2672, 1, 0
        %v2681 = vsel %vm2673, 1, 0
        %v2682 = vsel %vm2674, 1, 0
        %v2683 = vcvt.s32.f32 %v2675
        %v2684 = vcvt.s32.f32 %v2676
        %v2685 = vcvt.s32.f32 %v2677
        %v2686 = vcvt.s32.f32 %v2678
        %v2687 = vcvt.s32.f32 %v2679
        %v2688 = vcvt.s32.f32 %v2680
        %v2689 = vcvt.s32.f32 %v2681
        %v2690 = vcvt.s32.f32 %v2682
        %v2691 = vld [vmem:[#allocation3] sm:$0xff]
        %v2692 = vld [vmem:[#allocation3 + $0x8] sm:$0xff]
        %v2693 = vld [vmem:[#allocation3 + $0x10] sm:$0xff]
        %v2694 = vld [vmem:[#allocation3 + $0x18] sm:$0xff]
        %2695 = vmatprep.subr.mxu0 0.0
        %2696 = vmatpush1.msra.mxu0 %v2621
        %2697 = vmatprep.subr.mxu0 0.0
        %2698 = vmatpush1.msra.mxu0 %v2622
        %2699 = vmatprep.subr.mxu0 0.0
        %2700 = vmatpush1.msra.mxu0 %v2623
        %2701 = vmatprep.subr.mxu0 0.0
        %2702 = vmatpush1.msra.mxu0 %v2624
        %2703 = vmatprep.subr.mxu0 0.0
        %2704 = vmatpush1.msra.mxu0 %v2625
        %2705 = vmatprep.subr.mxu0 0.0
        %2706 = vmatpush1.msra.mxu0 %v2626
        %2707 = vmatprep.subr.mxu0 0.0
        %2708 = vmatpush1.msra.mxu0 %v2627
        %2709 = vmatprep.subr.mxu0 0.0
        %2710 = vmatpush1.msra.mxu0 %v2628
        %2711 = vmatprep.subr.mxu0 0.0
        %2712 = vmatpush1.msra.mxu0 %v2629
        %2713 = vmatprep.subr.mxu0 0.0
        %2714 = vmatpush1.msra.mxu0 %v2630
        %2715 = vmatprep.subr.mxu0 0.0
        %2716 = vmatpush1.msra.mxu0 %v2631
        %2717 = vmatprep.subr.mxu0 0.0
        %2718 = vmatpush1.msra.mxu0 %v2632
        %2719 = vmatprep.subr.mxu0 0.0
        %2720 = vmatpush1.msra.mxu0 %v2633
        %2721 = vmatprep.subr.mxu0 0.0
        %2722 = vmatpush1.msra.mxu0 %v2634
        %2723 = vmatprep.subr.mxu0 0.0
        %2724 = vmatpush1.msra.mxu0 %v2635
        %2725 = vmatprep.subr.mxu0 0.0
        %2726 = vmatpush1.msra.mxu0 %v2636
        %2727 = vmatprep.subr.mxu0 0.0
        %2728 = vmatpush1.msra.mxu0 %v2637
        %2729 = vmatprep.subr.mxu0 0.0
        %2730 = vmatpush1.msra.mxu0 %v2638
        %2731 = vmatprep.subr.mxu0 0.0
        %2732 = vmatpush1.msra.mxu0 %v2639
        %2733 = vmatprep.subr.mxu0 0.0
        %2734 = vmatpush1.msra.mxu0 %v2640
        %2735 = vmatprep.subr.mxu0 0.0
        %2736 = vmatpush1.msra.mxu0 %v2641
        %2737 = vmatprep.subr.mxu0 0.0
        %2738 = vmatpush1.msra.mxu0 %v2642
        %2739 = vmatprep.subr.mxu0 0.0
        %2740 = vmatpush1.msra.mxu0 %v2643
        %2741 = vmatprep.subr.mxu0 0.0
        %2742 = vmatpush1.msra.mxu0 %v2644
        %2743 = vmatprep.subr.mxu0 0.0
        %2744 = vmatpush1.msra.mxu0 %v2645
        %2745 = vmatprep.subr.mxu0 0.0
        %2746 = vmatpush1.msra.mxu0 %v2646
        %2747 = vmatprep.subr.mxu0 0.0
        %2748 = vmatpush1.msra.mxu0 %v2647
        %2749 = vmatprep.subr.mxu0 0.0
        %2750 = vmatpush1.msra.mxu0 %v2648
        %2751 = vmatprep.subr.mxu0 0.0
        %2752 = vmatpush1.msra.mxu0 %v2649
        %2753 = vmatprep.subr.mxu0 0.0
        %2754 = vmatpush1.msra.mxu0 %v2650
        %2755 = vmatprep.subr.mxu0 0.0
        %2756 = vmatpush1.msra.mxu0 %v2651
        %2757 = vmatprep.subr.mxu0 0.0
        %2758 = vmatpush1.msra.mxu0 %v2652
        %2759 = vmatprep.mubr.f32.mxu0 %v2684
        %2760 = vmatmul.mubr.f32.gmra.mrb[0].mxu0 %v2683
        %v2761 = vpop.f32.mrb[0].mxu0
        %v2762 = vadd.f32 0.0, %v2761
        %v2763 = vpop.f32.mrb[0].mxu0
        %2764 = vmatprep.mubr.f32.mxu0 %v2686
        %2765 = vmatmul.mubr.f32.gmra.mrb[0].mxu0 %v2685
        %v2766 = vpop.f32.mrb[0].mxu0
        %v2767 = vadd.f32 0.0, %v2766
        %v2768 = vpop.f32.mrb[0].mxu0
        %2769 = vmatprep.mubr.f32.mxu0 %v2688
        %2770 = vmatmul.mubr.f32.gmra.mrb[0].mxu0 %v2687
        %v2771 = vpop.f32.mrb[0].mxu0
        %v2772 = vadd.f32 0.0, %v2771
        %v2773 = vpop.f32.mrb[0].mxu0
        %2774 = vmatprep.mubr.f32.mxu0 %v2690
        %2775 = vmatmul.mubr.f32.gmra.mrb[0].mxu0 %v2689
        %v2776 = vpop.f32.mrb[0].mxu0
        %v2777 = vadd.f32 0.0, %v2776
        %v2778 = vpop.f32.mrb[0].mxu0
        %2779 = vdwg.mxu0
        %v2780 = vadd.f32 %v2691, %v2762
        %v2781 = vadd.f32 %v2692, %v2767
        %v2782 = vadd.f32 %v2693, %v2772
        %v2783 = vadd.f32 %v2694, %v2777
        %2784 = vst [vmem:[#allocation3] sm:$0xff] %v2780
        %2785 = vst [vmem:[#allocation3 + $0x8] sm:$0xff] %v2781
        %2786 = vst [vmem:[#allocation3 + $0x10] sm:$0xff] %v2782
        %2787 = vst [vmem:[#allocation3 + $0x18] sm:$0xff] %v2783
        %p2788 = scmp.eq.s32.totalorder %s32, 2
        // Predicated region
        $region73: #{tpu_custom_call.1} parent=55 // pred_check
          %p2789 = pneg %p2788
        $region74: #{tpu_custom_call.1} parent=55 // pred_check_branch
          %2791 = sbr.rel (%p2789) target = $region76
        $region75: #{tpu_custom_call.1} parent=55 // pred_region
          %v2792 = vld [vmem:[#allocation3] sm:$0xff]
          %v2793 = vld [vmem:[#allocation3 + $0x8] sm:$0xff]
          %v2794 = vld [vmem:[#allocation3 + $0x10] sm:$0xff]
          %v2795 = vld [vmem:[#allocation3 + $0x18] sm:$0xff]
          %v2796 = vmax.f32 %v2792, 0.0
          %v2797 = vmax.f32 %v2793, 0.0
          %v2798 = vmax.f32 %v2794, 0.0
          %v2799 = vmax.f32 %v2795, 0.0
          %2800 = vst [vmem:[%s502] sm:$0xff] %v2796
          %2801 = vst [vmem:[%s502 + $0x8] sm:$0xff] %v2797
          %2802 = vst [vmem:[%s502 + $0x10] sm:$0xff] %v2798
          %2803 = vst [vmem:[%s502 + $0x18] sm:$0xff] %v2799
        $region76: #{tpu_custom_call.1} parent=55 // pred_fallthru
          _
        %s2804 = sand.u32 %s276, 1
        %s2805 = scalar_lea.sflag [#allocation6], %s2804
        %s2806 = sand.u32 %s276, 1
        %s2807 = smul.addr %s2806, 32
        %s2808 = scalar_lea.vmem [#allocation10], %s2807
        // Predicated region
        $region77: #{tpu_custom_call.1} parent=55 // pred_check
          %p2809 = pneg %p286
        $region78: #{tpu_custom_call.1} parent=55 // pred_check_branch
          %2811 = sbr.rel (%p2809) target = $region80
        $region79: #{tpu_custom_call.1} parent=55 // pred_region
          %s2813 = ssub.s32 512, 512
          %2814 = vsyncadd %s2805, %s2813
          %s2815 = smul.addr %s31, 128
          %s2816 = scalar_lea.hbm %s9, %s2815
          %s2817 = sshll.u32 %s2808, 4
          %s2818 = int_to_ptr.vmem [resolvable:$true] %s2817
          %2823 = dma.vmem_to_hbm [thread:$0]  %s2818, 512, %s2816, %s2805, 128, 256, 8
        $region80: #{tpu_custom_call.1} parent=55 // pred_fallthru
          _
      $region56: #{tpu_custom_call.1} parent=5 // pred_fallthru
        _
      %p2824 = scmp.le.s32.totalorder 2, %s22
      // Predicated region
      $region81: #{tpu_custom_call.1} parent=5 // pred_check
        %p2825 = pneg %p2824
      $region82: #{tpu_custom_call.1} parent=5 // pred_check_branch
        %2827 = sbr.rel (%p2825) target = $region84
      $region83: #{tpu_custom_call.1} parent=5 // pred_region
        %s2828 = ssub.s32 %s22, 2
        // Predicated region
        $region85: #{tpu_custom_call.1} parent=83 // pred_check
          %p2829 = pneg %p292
        $region86: #{tpu_custom_call.1} parent=83 // pred_check_branch
          %2831 = sbr.rel (%p2829) target = $region88
        $region87: #{tpu_custom_call.1} parent=83 // pred_region
          %s2832 = sand.u32 %s277, 1
          %s2833 = scalar_lea.sflag [#allocation6], %s2832
          %s2834 = sand.u32 %s277, 1
          %s2835 = smul.addr %s2834, 32
          %s2836 = scalar_lea.vmem [#allocation10], %s2835
          %2837 = dma.done %s2833, 512
        $region88: #{tpu_custom_call.1} parent=83 // pred_fallthru
          _
      $region84: #{tpu_custom_call.1} parent=5 // pred_fallthru
        _
    $region6: #{tpu_custom_call.1} parent=1 // loop_footer
      %s26 = sadd.s32 1, %s22
    $region7: #{tpu_custom_call.1} parent=1 // loop_footer_branch
      %21 = sbr.rel target = $region3
    $region8: #{tpu_custom_call.1} parent=1 // loop_exit
      _
    %2838 = vsyncpa [#allocation5], 1
    %s2839 = scalar_lea.sflag [#allocation5], 1
    %2840 = vsyncpa %s2839, 1
    %2841 = vsyncpa [#allocation8], 1
    %s2842 = scalar_lea.sflag [#allocation8], 1
    %2843 = vsyncpa %s2842, 1
    %2844 = vsyncpa [#allocation6], 1
    %s2845 = scalar_lea.sflag [#allocation6], 1
    %2846 = vsyncpa %s2845, 1

</llo_original>
